<compile_context>
chip_gen: v7x
topology: tpu7x:2x2x1
jax: 0.10.0
libtpu: 0.0.40
codegen_flags: <defaults>
</compile_context>

<pallas_src>
import jax
import jax.numpy as jnp
from jax import lax
from jax.experimental import pallas as pl
from jax.experimental.pallas import tpu as pltpu

# ----------------------------- config (small shapes) -----------------------------
FIELD_DIMS = (10, 20, 30, 40)
NUM_FIELDS = len(FIELD_DIMS)                 # F = 4
EMBED_DIM = 16                               # E
MLP_DIMS = (32, 16)
CROSS_LAYER_SIZES = (8, 4)                   # split_half = True
BATCH = 16
BN_EPS = 1e-5

C0 = CROSS_LAYER_SIZES[0]                    # 8
C1 = CROSS_LAYER_SIZES[1]                    # 4
HALF = C0 // 2                               # 4
FC_IN = HALF + C1                            # 8
IN_DIM = NUM_FIELDS * EMBED_DIM              # 64
TOTAL_VOCAB = sum(FIELD_DIMS)                # 100
VBLK = TOTAL_VOCAB                           # per-field stride inside the selector
SEL_W = NUM_FIELDS * VBLK                    # 400
CIN0_W = NUM_FIELDS * C0 * EMBED_DIM         # 512
CIN1_W = NUM_FIELDS * C1 * EMBED_DIM         # 256

_offs = [0]
for _d in FIELD_DIMS[:-1]:
    _offs.append(_offs[-1] + _d)
OFFSETS = tuple(_offs)                                            # python ints
OFFSETS_ARR = jnp.asarray(_offs, jnp.int32)                       # for the reference
# per-field constant added to the raw index inside the kernel: f*VBLK + field offset
FIELD_BASE = tuple(f * VBLK + OFFSETS[f] for f in range(NUM_FIELDS))   # (0,110,230,360)

# ------------------------- packed weight slab layouts ------------------------------
# narrow slab (128 lanes): embedding table (block diagonal), MLP weights, small rows
NARROW_COLS = 128
R_EMBW = 0                                   # (400, 64)  block-diag embedding table
R_W1 = R_EMBW + SEL_W                        # 400  (64, 32)  w1 * s1
R_W2 = R_W1 + IN_DIM                         # 464  (32, 16)  w2 * s2
R_B1 = R_W2 + MLP_DIMS[0]                    # 496  (1, 32)   b1*s1 + t1
R_B2 = R_B1 + 1                              # 497  (1, 16)   b2*s2 + t2
R_BC0 = R_B2 + 1                             # 498  (1, 128)  bc0 replicated over E
R_BC1 = R_BC0 + 1                            # 499  (1, 64)   bc1 replicated over E
R_WCF0 = R_BC1 + 1                           # 500  (1, 64)   wcf[:HALF] replicated over E
R_WCF1 = R_WCF0 + 1                          # 501  (1, 64)   wcf[HALF:] replicated over E
R_W3 = R_WCF1 + 1                            # 502  (1, 16)   MLP head
NARROW_ROWS = 504

# wide slab (512 lanes): CIN conv weights (E-block-diag) + x0-replication selectors + lin row
WIDE_COLS = 512
R_WM0 = 0                                    # (64, 512)
R_R0 = R_WM0 + IN_DIM                        # 64   (64, 512) 0/1 replication matrix
R_WM1 = R_R0 + IN_DIM                        # 128  (64, 256)
R_R1 = R_WM1 + HALF * EMBED_DIM              # 192  (64, 256) 0/1 replication matrix
R_LIN = R_R1 + IN_DIM                        # 256  (1, 400)  lin table tiled + folded bias
WIDE_ROWS = 264


# ----------------------------------- kernel --------------------------------------
def xdeepfm_kernel(idx_ref, nsl_ref, wsl_ref, out_ref):
    tb = idx_ref.shape[0]
    idxv = idx_ref[...]                                            # (tb, F) int32

    # ---- one-hot field selector, built on the VPU (feedback #1) ----
    lanes = lax.broadcasted_iota(jnp.int32, (tb, SEL_W), 1)
    hit = lanes == (idxv[:, 0:1] + FIELD_BASE[0])
    for f in range(1, NUM_FIELDS):
        hit = hit | (lanes == (idxv[:, f:f + 1] + FIELD_BASE[f]))
    sel = jnp.where(hit, 1.0, 0.0)                                 # (tb, 400) f32, 4 ones/row

    # ---- static views of the packed weight slabs (zero-cost) ----
    embw = nsl_ref[R_EMBW:R_EMBW + SEL_W, 0:IN_DIM]                # (400, 64)
    w1 = nsl_ref[R_W1:R_W1 + IN_DIM, 0:MLP_DIMS[0]]                # (64, 32)
    w2 = nsl_ref[R_W2:R_W2 + MLP_DIMS[0], 0:MLP_DIMS[1]]           # (32, 16)
    b1 = nsl_ref[R_B1:R_B1 + 1, 0:MLP_DIMS[0]]                     # (1, 32)
    b2 = nsl_ref[R_B2:R_B2 + 1, 0:MLP_DIMS[1]]                     # (1, 16)
    bc0row = nsl_ref[R_BC0:R_BC0 + 1, 0:C0 * EMBED_DIM]            # (1, 128)
    bc1row = nsl_ref[R_BC1:R_BC1 + 1, 0:C1 * EMBED_DIM]            # (1, 64)
    wcf0 = nsl_ref[R_WCF0:R_WCF0 + 1, 0:HALF * EMBED_DIM]          # (1, 64)
    wcf1 = nsl_ref[R_WCF1:R_WCF1 + 1, 0:C1 * EMBED_DIM]            # (1, 64)
    w3row = nsl_ref[R_W3:R_W3 + 1, 0:MLP_DIMS[1]]                  # (1, 16)

    wm0 = wsl_ref[R_WM0:R_WM0 + IN_DIM, 0:CIN0_W]                  # (64, 512)
    r0 = wsl_ref[R_R0:R_R0 + IN_DIM, 0:CIN0_W]                     # (64, 512)
    wm1 = wsl_ref[R_WM1:R_WM1 + HALF * EMBED_DIM, 0:CIN1_W]        # (64, 256)
    r1 = wsl_ref[R_R1:R_R1 + IN_DIM, 0:CIN1_W]                     # (64, 256)
    linw = wsl_ref[R_LIN:R_LIN + 1, 0:SEL_W]                       # (1, 400)

    # ---- in-kernel gather via MXU: flat[b, f*E+e] = emb_table[idx_abs[b,f], e] ----
    flat = jnp.dot(sel, embw, preferred_element_type=jnp.float32)  # (tb, 64)

    nt = (((1,), (1,)), ((), ()))
    # linear term (lin table + all scalar biases folded in), lane-dense (1, tb)
    lin_row = lax.dot_general(linw, sel, nt, preferred_element_type=jnp.float32)

    # ---- CIN layer 0: (B, [i, o, e]) layout, all blocks lane-dense (feedback #2/#5) ----
    y0 = jnp.dot(flat, wm0, preferred_element_type=jnp.float32)    # (tb, 512) sum_j wc0*x0_j
    x0r = jnp.dot(flat, r0, preferred_element_type=jnp.float32)    # (tb, 512) x0 replicated
    p0 = x0r * y0
    blk0 = C0 * EMBED_DIM                                          # 128 (vreg-aligned blocks)
    z0 = p0[:, 0:blk0] + p0[:, blk0:2 * blk0] + p0[:, 2 * blk0:3 * blk0] + p0[:, 3 * blk0:4 * blk0]
    z0 = jnp.maximum(z0 + bc0row, 0.0)                             # (tb, 128)  [o, e] lanes

    hcin = z0[:, HALF * EMBED_DIM:]                                # (tb, 64) second half -> next layer

    # ---- CIN layer 1 ----
    y1 = jnp.dot(hcin, wm1, preferred_element_type=jnp.float32)    # (tb, 256)
    x1r = jnp.dot(flat, r1, preferred_element_type=jnp.float32)    # (tb, 256)
    p1 = x1r * y1
    blk1 = C1 * EMBED_DIM                                          # 64
    z1 = p1[:, 0:blk1] + p1[:, blk1:2 * blk1] + p1[:, 2 * blk1:3 * blk1] + p1[:, 3 * blk1:4 * blk1]
    z1 = jnp.maximum(z1 + bc1row, 0.0)                             # (tb, 64)

    # ---- MLP (eval-mode BN + bias folded into weights, dropout = identity) ----
    h1 = jnp.maximum(jnp.dot(flat, w1, preferred_element_type=jnp.float32) + b1, 0.0)
    h2 = jnp.maximum(jnp.dot(h1, w2, preferred_element_type=jnp.float32) + b2, 0.0)

    # ---- heads: pooling folded into E-replicated weight rows, separate NT dots, no concat ----
    cin0 = lax.dot_general(wcf0, z0[:, 0:HALF * EMBED_DIM], nt, preferred_element_type=jnp.float32)
    cin1 = lax.dot_general(wcf1, z1, nt, preferred_element_type=jnp.float32)
    mlp = lax.dot_general(w3row, h2, nt, preferred_element_type=jnp.float32)

    total = lin_row + cin0 + cin1 + mlp                            # (1, tb) lane-dense
    # CELU(alpha=1); clamp before exp so the unselected branch never produces inf.
    out_ref[...] = jnp.where(total > 0, total, jnp.exp(jnp.minimum(total, 0.0)) - 1.0)


# ---------------------------------- wrapper ---------------------------------------
def xdeepfm_forward(x_idx, nslab, wslab, *, tb=None):
    """x_idx: (B, F) int32 raw per-field indices -> (B,) f32 model output."""
    b = x_idx.shape[0]
    tb = b if tb is None else tb                  # single grid step for small B
    assert b % tb == 0

    # v7x: only mark the batch axis parallel when a 128-lane output tile is fully owned
    # by one core (feedback #7); for B=16 this is a single "arbitrary" step anyway.
    semantics = ("parallel",) if tb % 128 == 0 else ("arbitrary",)

    mm_flops_per_row = (SEL_W * IN_DIM + SEL_W
                        + 2 * IN_DIM * CIN0_W
                        + HALF * EMBED_DIM * CIN1_W + IN_DIM * CIN1_W
                        + IN_DIM * MLP_DIMS[0] + MLP_DIMS[0] * MLP_DIMS[1]
                        + HALF * EMBED_DIM + C1 * EMBED_DIM + MLP_DIMS[1])
    cost = pl.CostEstimate(
        flops=2 * b * mm_flops_per_row,
        transcendentals=b,
        bytes_accessed=int(nslab.size * 4 + wslab.size * 4 + x_idx.size * 4 + b * 4))

    out = pl.pallas_call(
        xdeepfm_kernel,
        out_shape=jax.ShapeDtypeStruct((1, b), jnp.float32),
        grid_spec=pltpu.PrefetchScalarGridSpec(
            num_scalar_prefetch=0,
            grid=(b // tb,),
            in_specs=[
                pl.BlockSpec((tb, NUM_FIELDS), lambda i: (i, 0)),          # raw indices
                pl.BlockSpec((NARROW_ROWS, NARROW_COLS), lambda i: (0, 0)),  # narrow slab
                pl.BlockSpec((WIDE_ROWS, WIDE_COLS), lambda i: (0, 0)),      # wide slab
            ],
            out_specs=pl.BlockSpec((1, tb), lambda i: (0, i)),
        ),
        compiler_params=pltpu.CompilerParams(dimension_semantics=semantics),
        cost_estimate=cost,
    )(x_idx, nslab, wslab)
    return out[0]


# ----------------------- weight packing / folding (one-time glue) ------------------
def pack_params(p):
    emb = p['emb_table']                           # (100, 16)
    lint = p['lin_table'][:, 0]                    # (100,)
    eyeE = jnp.eye(EMBED_DIM, dtype=jnp.float32)
    eyeF = jnp.eye(NUM_FIELDS, dtype=jnp.float32)

    # ---------------- narrow slab ----------------
    nsl = jnp.zeros((NARROW_ROWS, NARROW_COLS), jnp.float32)
    for f in range(NUM_FIELDS):                    # block-diagonal embedding table
        nsl = nsl.at[R_EMBW + f * VBLK: R_EMBW + f * VBLK + TOTAL_VOCAB,
                     f * EMBED_DIM:(f + 1) * EMBED_DIM].set(emb)
    w1f = p['w1'] * p['s1']
    b1f = p['b1'] * p['s1'] + p['t1']
    w2f = p['w2'] * p['s2']
    b2f = p['b2'] * p['s2'] + p['t2']
    nsl = nsl.at[R_W1:R_W1 + IN_DIM, :MLP_DIMS[0]].set(w1f)
    nsl = nsl.at[R_W2:R_W2 + MLP_DIMS[0], :MLP_DIMS[1]].set(w2f)
    nsl = nsl.at[R_B1, :MLP_DIMS[0]].set(b1f[0])
    nsl = nsl.at[R_B2, :MLP_DIMS[1]].set(b2f[0])
    nsl = nsl.at[R_BC0, :C0 * EMBED_DIM].set(jnp.repeat(p['bc0'][0], EMBED_DIM))
    nsl = nsl.at[R_BC1, :C1 * EMBED_DIM].set(jnp.repeat(p['bc1'][0], EMBED_DIM))
    wcf = p['wcf'][:, 0]
    nsl = nsl.at[R_WCF0, :HALF * EMBED_DIM].set(jnp.repeat(wcf[:HALF], EMBED_DIM))
    nsl = nsl.at[R_WCF1, :C1 * EMBED_DIM].set(jnp.repeat(wcf[HALF:], EMBED_DIM))
    nsl = nsl.at[R_W3, :MLP_DIMS[1]].set(p['w3'][:, 0])

    # ---------------- wide slab ----------------
    wsl = jnp.zeros((WIDE_ROWS, WIDE_COLS), jnp.float32)
    # Wmat[j*E+e', i*C*E + o*E + e] = wc[i*prev + j, o] * (e==e')   (per-e block diagonal)
    wc0r = p['wc0'].reshape(NUM_FIELDS, NUM_FIELDS, C0)            # [i, j, o]
    wm0 = jnp.einsum('ijo,ce->jcioe', wc0r, eyeE).reshape(IN_DIM, CIN0_W)
    wc1r = p['wc1'].reshape(NUM_FIELDS, HALF, C1)                  # [i, j, o]
    wm1 = jnp.einsum('ijo,ce->jcioe', wc1r, eyeE).reshape(HALF * EMBED_DIM, CIN1_W)
    # R[i'*E+e', i*C*E + o*E + e] = (i==i')*(e==e')  -> replicates x0 block i across o
    r0 = jnp.einsum('ab,o,ce->acboe', eyeF, jnp.ones((C0,), jnp.float32), eyeE
                    ).reshape(IN_DIM, CIN0_W)
    r1 = jnp.einsum('ab,o,ce->acboe', eyeF, jnp.ones((C1,), jnp.float32), eyeE
                    ).reshape(IN_DIM, CIN1_W)
    wsl = wsl.at[R_WM0:R_WM0 + IN_DIM, :CIN0_W].set(wm0)
    wsl = wsl.at[R_R0:R_R0 + IN_DIM, :CIN0_W].set(r0)
    wsl = wsl.at[R_WM1:R_WM1 + HALF * EMBED_DIM, :CIN1_W].set(wm1)
    wsl = wsl.at[R_R1:R_R1 + IN_DIM, :CIN1_W].set(r1)
    # linear table tiled per field; scalar biases (lin_bias + bcf + b3) folded in as
    # bias/F per entry (each selector row has exactly F ones).
    bias_scalar = p['lin_bias'] + p['bcf'][0, 0] + p['b3'][0, 0]
    linw = jnp.tile(lint, NUM_FIELDS) + bias_scalar / NUM_FIELDS
    wsl = wsl.at[R_LIN, :SEL_W].set(linw)
    return nsl, wsl


# -------------------------- deterministic parameter init ---------------------------
def init_params(key):
    ks = jax.random.split(key, 24)
    total = sum(FIELD_DIMS)
    p = {}
    p['emb_table'] = 0.1 * jax.random.normal(ks[0], (total, EMBED_DIM), jnp.float32)
    p['lin_table'] = 0.1 * jax.random.normal(ks[1], (total, 1), jnp.float32)
    p['lin_bias'] = jnp.float32(0.05)

    # CIN 1x1-conv weights, stored transposed as (C_in, C_out)
    p['wc0'] = 0.2 * jax.random.normal(ks[2], (NUM_FIELDS * NUM_FIELDS, C0), jnp.float32)
    p['bc0'] = 0.1 * jax.random.normal(ks[3], (1, C0), jnp.float32)
    p['wc1'] = 0.2 * jax.random.normal(ks[4], (NUM_FIELDS * HALF, C1), jnp.float32)
    p['bc1'] = 0.1 * jax.random.normal(ks[5], (1, C1), jnp.float32)
    p['wcf'] = 0.2 * jax.random.normal(ks[6], (FC_IN, 1), jnp.float32)
    p['bcf'] = jnp.full((1, 1), 0.02, jnp.float32)

    # MLP: Linear weights stored as (in, out); BN (eval) folded into scale s / shift t
    dims = (IN_DIM,) + MLP_DIMS
    kidx = 7
    for li in range(len(MLP_DIMS)):
        p[f'w{li+1}'] = 0.1 * jax.random.normal(ks[kidx], (dims[li], dims[li + 1]), jnp.float32); kidx += 1
        p[f'b{li+1}'] = 0.1 * jax.random.normal(ks[kidx], (1, dims[li + 1]), jnp.float32); kidx += 1
        gamma = 1.0 + 0.1 * jax.random.normal(ks[kidx], (1, dims[li + 1]), jnp.float32); kidx += 1
        beta = 0.1 * jax.random.normal(ks[kidx], (1, dims[li + 1]), jnp.float32); kidx += 1
        mean = 0.05 * jax.random.normal(ks[kidx], (1, dims[li + 1]), jnp.float32); kidx += 1
        var = jnp.abs(1.0 + 0.1 * jax.random.normal(ks[kidx], (1, dims[li + 1]), jnp.float32)); kidx += 1
        s = gamma / jnp.sqrt(var + BN_EPS)
        p[f's{li+1}'] = s
        p[f't{li+1}'] = beta - mean * s
    p['w3'] = 0.1 * jax.random.normal(ks[kidx], (MLP_DIMS[-1], 1), jnp.float32); kidx += 1
    p['b3'] = jnp.full((1, 1), 0.03, jnp.float32)
    return p


# ------------------------------- pure-JAX reference --------------------------------
def reference_forward(x_idx, params):
    idx = x_idx + OFFSETS_ARR[None, :]
    emb = params['emb_table'][idx]                                        # (B, F, E)
    lin = params['lin_table'][idx][..., 0].sum(axis=1, keepdims=True) + params['lin_bias']

    bsz = emb.shape[0]
    x0, h = emb, emb
    xs = []
    # layer 0
    x = (x0[:, :, None, :] * h[:, None, :, :]).reshape(bsz, -1, EMBED_DIM)
    z = jax.nn.relu(jnp.einsum('bce,co->boe', x, params['wc0']) + params['bc0'][0][None, :, None])
    xs.append(z[:, :HALF, :]); h = z[:, HALF:, :]
    # layer 1
    x = (x0[:, :, None, :] * h[:, None, :, :]).reshape(bsz, -1, EMBED_DIM)
    z = jax.nn.relu(jnp.einsum('bce,co->boe', x, params['wc1']) + params['bc1'][0][None, :, None])
    xs.append(z)
    pooled = jnp.concatenate(xs, axis=1).sum(axis=2)                      # (B, fc_in)
    cin_out = pooled @ params['wcf'] + params['bcf'][0, 0]

    flat = emb.reshape(bsz, -1)
    h1 = jax.nn.relu((flat @ params['w1'] + params['b1']) * params['s1'] + params['t1'])
    h2 = jax.nn.relu((h1 @ params['w2'] + params['b2']) * params['s2'] + params['t2'])
    mlp_out = h2 @ params['w3'] + params['b3'][0, 0]

    total = (lin + cin_out + mlp_out)[:, 0]
    return jnp.where(total > 0, total, jnp.exp(total) - 1.0)


# ------------------------------------- main -----------------------------------------
if __name__ == "__main__":
    key = jax.random.PRNGKey(0)
    pkey, xkey = jax.random.split(key)
    params = init_params(pkey)
    nslab, wslab = pack_params(params)

    # categorical feature indices, one column per field
    xkeys = jax.random.split(xkey, NUM_FIELDS)
    x_idx = jnp.stack(
        [jax.random.randint(xkeys[f], (BATCH,), 0, FIELD_DIMS[f], dtype=jnp.int32)
         for f in range(NUM_FIELDS)],
        axis=1)                                                            # (B, F) int32

    fwd = jax.jit(xdeepfm_forward)
    out = jax.block_until_ready(fwd(x_idx, nslab, wslab))

    ref = reference_forward(x_idx, params)
    assert out.shape == (BATCH,)
    assert jnp.allclose(out, ref, rtol=1e-4, atol=1e-4), (out, ref)
    print("KERNEL_OK")
</pallas_src>

<mosaic_0001>
module attributes {stable_mosaic.version = 11 : i64} {
  func.func @xdeepfm_kernel(%arg0: i32, %arg1: memref<16x4xi32, #tpu.memory_space<vmem>>, %arg2: memref<504x128xf32, #tpu.memory_space<vmem>>, %arg3: memref<264x512xf32, #tpu.memory_space<vmem>>, %arg4: memref<1x16xf32, #tpu.memory_space<vmem>>) attributes {dimension_semantics = [#tpu.dimension_semantics<arbitrary>], iteration_bounds = array<i64: 1>, scalar_prefetch = 0 : i64, scratch_operands = 0 : i64, tpu.core_type = #tpu.core_type<tc>, window_params = [{transform_indices = @transform_0, window_bounds = array<i64: 16, 4>}, {pipeline_mode = #tpu.pipeline_mode<synchronous>, transform_indices = @transform_1, window_bounds = array<i64: 504, 128>}, {pipeline_mode = #tpu.pipeline_mode<synchronous>, transform_indices = @transform_2, window_bounds = array<i64: 264, 512>}, {transform_indices = @transform_3, window_bounds = array<i64: 1, 16>}]} {
    %c0 = arith.constant 0 : index
    %c0_0 = arith.constant 0 : index
    %0 = vector.load %arg1[%c0, %c0_0] : memref<16x4xi32, #tpu.memory_space<vmem>>, vector<16x4xi32>
    %1 = tpu.iota {dimensions = array<i32: 1>} : vector<16x400xi32>
    %2 = vector.extract_strided_slice %0 {offsets = [0, 0], sizes = [16, 1], strides = [1, 1]} : vector<16x4xi32> to vector<16x1xi32>
    %c0_i32 = arith.constant 0 : i32
    %3 = vector.broadcast %c0_i32 : i32 to vector<16x1xi32>
    %4 = arith.addi %2, %3 : vector<16x1xi32>
    %5 = vector.broadcast %4 : vector<16x1xi32> to vector<16x400xi32>
    %6 = arith.cmpi eq, %1, %5 : vector<16x400xi32>
    %7 = vector.extract_strided_slice %0 {offsets = [0, 1], sizes = [16, 1], strides = [1, 1]} : vector<16x4xi32> to vector<16x1xi32>
    %c110_i32 = arith.constant 110 : i32
    %8 = vector.broadcast %c110_i32 : i32 to vector<16x1xi32>
    %9 = arith.addi %7, %8 : vector<16x1xi32>
    %10 = vector.broadcast %9 : vector<16x1xi32> to vector<16x400xi32>
    %11 = arith.cmpi eq, %1, %10 : vector<16x400xi32>
    %12 = arith.ori %6, %11 : vector<16x400xi1>
    %13 = vector.extract_strided_slice %0 {offsets = [0, 2], sizes = [16, 1], strides = [1, 1]} : vector<16x4xi32> to vector<16x1xi32>
    %c230_i32 = arith.constant 230 : i32
    %14 = vector.broadcast %c230_i32 : i32 to vector<16x1xi32>
    %15 = arith.addi %13, %14 : vector<16x1xi32>
    %16 = vector.broadcast %15 : vector<16x1xi32> to vector<16x400xi32>
    %17 = arith.cmpi eq, %1, %16 : vector<16x400xi32>
    %18 = arith.ori %12, %17 : vector<16x400xi1>
    %19 = vector.extract_strided_slice %0 {offsets = [0, 3], sizes = [16, 1], strides = [1, 1]} : vector<16x4xi32> to vector<16x1xi32>
    %c360_i32 = arith.constant 360 : i32
    %20 = vector.broadcast %c360_i32 : i32 to vector<16x1xi32>
    %21 = arith.addi %19, %20 : vector<16x1xi32>
    %22 = vector.broadcast %21 : vector<16x1xi32> to vector<16x400xi32>
    %23 = arith.cmpi eq, %1, %22 : vector<16x400xi32>
    %24 = arith.ori %18, %23 : vector<16x400xi1>
    %cst = arith.constant 1.000000e+00 : f32
    %cst_1 = arith.constant 0.000000e+00 : f32
    %25 = vector.broadcast %cst : f32 to vector<16x400xf32>
    %26 = vector.broadcast %cst_1 : f32 to vector<16x400xf32>
    %27 = arith.select %24, %25, %26 : vector<16x400xi1>, vector<16x400xf32>
    %c0_2 = arith.constant 0 : index
    %c0_3 = arith.constant 0 : index
    %28 = vector.load %arg2[%c0_2, %c0_3] : memref<504x128xf32, #tpu.memory_space<vmem>>, vector<400x64xf32>
    %c400 = arith.constant 400 : index
    %c0_4 = arith.constant 0 : index
    %29 = vector.load %arg2[%c400, %c0_4] : memref<504x128xf32, #tpu.memory_space<vmem>>, vector<64x32xf32>
    %c464 = arith.constant 464 : index
    %c0_5 = arith.constant 0 : index
    %30 = vector.load %arg2[%c464, %c0_5] : memref<504x128xf32, #tpu.memory_space<vmem>>, vector<32x16xf32>
    %c496 = arith.constant 496 : index
    %c0_6 = arith.constant 0 : index
    %31 = vector.load %arg2[%c496, %c0_6] : memref<504x128xf32, #tpu.memory_space<vmem>>, vector<1x32xf32>
    %c497 = arith.constant 497 : index
    %c0_7 = arith.constant 0 : index
    %32 = vector.load %arg2[%c497, %c0_7] : memref<504x128xf32, #tpu.memory_space<vmem>>, vector<1x16xf32>
    %c498 = arith.constant 498 : index
    %c0_8 = arith.constant 0 : index
    %33 = vector.load %arg2[%c498, %c0_8] : memref<504x128xf32, #tpu.memory_space<vmem>>, vector<1x128xf32>
    %c499 = arith.constant 499 : index
    %c0_9 = arith.constant 0 : index
    %34 = vector.load %arg2[%c499, %c0_9] : memref<504x128xf32, #tpu.memory_space<vmem>>, vector<1x64xf32>
    %c500 = arith.constant 500 : index
    %c0_10 = arith.constant 0 : index
    %35 = vector.load %arg2[%c500, %c0_10] : memref<504x128xf32, #tpu.memory_space<vmem>>, vector<1x64xf32>
    %c501 = arith.constant 501 : index
    %c0_11 = arith.constant 0 : index
    %36 = vector.load %arg2[%c501, %c0_11] : memref<504x128xf32, #tpu.memory_space<vmem>>, vector<1x64xf32>
    %c502 = arith.constant 502 : index
    %c0_12 = arith.constant 0 : index
    %37 = vector.load %arg2[%c502, %c0_12] : memref<504x128xf32, #tpu.memory_space<vmem>>, vector<1x16xf32>
    %c0_13 = arith.constant 0 : index
    %c0_14 = arith.constant 0 : index
    %38 = vector.load %arg3[%c0_13, %c0_14] : memref<264x512xf32, #tpu.memory_space<vmem>>, vector<64x512xf32>
    %c64 = arith.constant 64 : index
    %c0_15 = arith.constant 0 : index
    %39 = vector.load %arg3[%c64, %c0_15] : memref<264x512xf32, #tpu.memory_space<vmem>>, vector<64x512xf32>
    %c128 = arith.constant 128 : index
    %c0_16 = arith.constant 0 : index
    %40 = vector.load %arg3[%c128, %c0_16] : memref<264x512xf32, #tpu.memory_space<vmem>>, vector<64x256xf32>
    %c192 = arith.constant 192 : index
    %c0_17 = arith.constant 0 : index
    %41 = vector.load %arg3[%c192, %c0_17] : memref<264x512xf32, #tpu.memory_space<vmem>>, vector<64x256xf32>
    %c256 = arith.constant 256 : index
    %c0_18 = arith.constant 0 : index
    %42 = vector.load %arg3[%c256, %c0_18] : memref<264x512xf32, #tpu.memory_space<vmem>>, vector<1x400xf32>
    %cst_19 = arith.constant dense<0.000000e+00> : vector<16x64xf32>
    %43 = tpu.matmul %27, %28, %cst_19 {dimension_numbers = #tpu.dot_dimension_numbers<[1], [0], [0], [1], [0, 0, 1, 1], [], []>} : vector<16x400xf32>, vector<400x64xf32>, vector<16x64xf32> -> vector<16x64xf32>
    %cst_20 = arith.constant dense<0.000000e+00> : vector<1x16xf32>
    %44 = tpu.matmul %42, %27, %cst_20 {dimension_numbers = #tpu.dot_dimension_numbers<[1], [1], [0], [0], [0, 0, 1, 0], [], []>} : vector<1x400xf32>, vector<16x400xf32>, vector<1x16xf32> -> vector<1x16xf32>
    %cst_21 = arith.constant dense<0.000000e+00> : vector<16x512xf32>
    %45 = tpu.matmul %43, %38, %cst_21 {dimension_numbers = #tpu.dot_dimension_numbers<[1], [0], [0], [1], [0, 0, 1, 1], [], []>} : vector<16x64xf32>, vector<64x512xf32>, vector<16x512xf32> -> vector<16x512xf32>
    %cst_22 = arith.constant dense<0.000000e+00> : vector<16x512xf32>
    %46 = tpu.matmul %43, %39, %cst_22 {dimension_numbers = #tpu.dot_dimension_numbers<[1], [0], [0], [1], [0, 0, 1, 1], [], []>} : vector<16x64xf32>, vector<64x512xf32>, vector<16x512xf32> -> vector<16x512xf32>
    %47 = arith.mulf %46, %45 : vector<16x512xf32>
    %48 = vector.extract_strided_slice %47 {offsets = [0, 0], sizes = [16, 128], strides = [1, 1]} : vector<16x512xf32> to vector<16x128xf32>
    %49 = vector.extract_strided_slice %47 {offsets = [0, 128], sizes = [16, 128], strides = [1, 1]} : vector<16x512xf32> to vector<16x128xf32>
    %50 = arith.addf %48, %49 : vector<16x128xf32>
    %51 = vector.extract_strided_slice %47 {offsets = [0, 256], sizes = [16, 128], strides = [1, 1]} : vector<16x512xf32> to vector<16x128xf32>
    %52 = arith.addf %50, %51 : vector<16x128xf32>
    %53 = vector.extract_strided_slice %47 {offsets = [0, 384], sizes = [16, 128], strides = [1, 1]} : vector<16x512xf32> to vector<16x128xf32>
    %54 = arith.addf %52, %53 : vector<16x128xf32>
    %55 = vector.broadcast %33 : vector<1x128xf32> to vector<16x128xf32>
    %56 = arith.addf %54, %55 : vector<16x128xf32>
    %cst_23 = arith.constant 0.000000e+00 : f32
    %57 = vector.broadcast %cst_23 : f32 to vector<16x128xf32>
    %58 = arith.maximumf %56, %57 : vector<16x128xf32>
    %59 = vector.extract_strided_slice %58 {offsets = [0, 64], sizes = [16, 64], strides = [1, 1]} : vector<16x128xf32> to vector<16x64xf32>
    %cst_24 = arith.constant dense<0.000000e+00> : vector<16x256xf32>
    %60 = tpu.matmul %59, %40, %cst_24 {dimension_numbers = #tpu.dot_dimension_numbers<[1], [0], [0], [1], [0, 0, 1, 1], [], []>} : vector<16x64xf32>, vector<64x256xf32>, vector<16x256xf32> -> vector<16x256xf32>
    %cst_25 = arith.constant dense<0.000000e+00> : vector<16x256xf32>
    %61 = tpu.matmul %43, %41, %cst_25 {dimension_numbers = #tpu.dot_dimension_numbers<[1], [0], [0], [1], [0, 0, 1, 1], [], []>} : vector<16x64xf32>, vector<64x256xf32>, vector<16x256xf32> -> vector<16x256xf32>
    %62 = arith.mulf %61, %60 : vector<16x256xf32>
    %63 = vector.extract_strided_slice %62 {offsets = [0, 0], sizes = [16, 64], strides = [1, 1]} : vector<16x256xf32> to vector<16x64xf32>
    %64 = vector.extract_strided_slice %62 {offsets = [0, 64], sizes = [16, 64], strides = [1, 1]} : vector<16x256xf32> to vector<16x64xf32>
    %65 = arith.addf %63, %64 : vector<16x64xf32>
    %66 = vector.extract_strided_slice %62 {offsets = [0, 128], sizes = [16, 64], strides = [1, 1]} : vector<16x256xf32> to vector<16x64xf32>
    %67 = arith.addf %65, %66 : vector<16x64xf32>
    %68 = vector.extract_strided_slice %62 {offsets = [0, 192], sizes = [16, 64], strides = [1, 1]} : vector<16x256xf32> to vector<16x64xf32>
    %69 = arith.addf %67, %68 : vector<16x64xf32>
    %70 = vector.broadcast %34 : vector<1x64xf32> to vector<16x64xf32>
    %71 = arith.addf %69, %70 : vector<16x64xf32>
    %cst_26 = arith.constant 0.000000e+00 : f32
    %72 = vector.broadcast %cst_26 : f32 to vector<16x64xf32>
    %73 = arith.maximumf %71, %72 : vector<16x64xf32>
    %cst_27 = arith.constant dense<0.000000e+00> : vector<16x32xf32>
    %74 = tpu.matmul %43, %29, %cst_27 {dimension_numbers = #tpu.dot_dimension_numbers<[1], [0], [0], [1], [0, 0, 1, 1], [], []>} : vector<16x64xf32>, vector<64x32xf32>, vector<16x32xf32> -> vector<16x32xf32>
    %75 = vector.broadcast %31 : vector<1x32xf32> to vector<16x32xf32>
    %76 = arith.addf %74, %75 : vector<16x32xf32>
    %cst_28 = arith.constant 0.000000e+00 : f32
    %77 = vector.broadcast %cst_28 : f32 to vector<16x32xf32>
    %78 = arith.maximumf %76, %77 : vector<16x32xf32>
    %cst_29 = arith.constant dense<0.000000e+00> : vector<16x16xf32>
    %79 = tpu.matmul %78, %30, %cst_29 {dimension_numbers = #tpu.dot_dimension_numbers<[1], [0], [0], [1], [0, 0, 1, 1], [], []>} : vector<16x32xf32>, vector<32x16xf32>, vector<16x16xf32> -> vector<16x16xf32>
    %80 = vector.broadcast %32 : vector<1x16xf32> to vector<16x16xf32>
    %81 = arith.addf %79, %80 : vector<16x16xf32>
    %cst_30 = arith.constant 0.000000e+00 : f32
    %82 = vector.broadcast %cst_30 : f32 to vector<16x16xf32>
    %83 = arith.maximumf %81, %82 : vector<16x16xf32>
    %84 = vector.extract_strided_slice %58 {offsets = [0, 0], sizes = [16, 64], strides = [1, 1]} : vector<16x128xf32> to vector<16x64xf32>
    %cst_31 = arith.constant dense<0.000000e+00> : vector<1x16xf32>
    %85 = tpu.matmul %35, %84, %cst_31 {dimension_numbers = #tpu.dot_dimension_numbers<[1], [1], [0], [0], [0, 0, 1, 0], [], []>} : vector<1x64xf32>, vector<16x64xf32>, vector<1x16xf32> -> vector<1x16xf32>
    %cst_32 = arith.constant dense<0.000000e+00> : vector<1x16xf32>
    %86 = tpu.matmul %36, %73, %cst_32 {dimension_numbers = #tpu.dot_dimension_numbers<[1], [1], [0], [0], [0, 0, 1, 0], [], []>} : vector<1x64xf32>, vector<16x64xf32>, vector<1x16xf32> -> vector<1x16xf32>
    %cst_33 = arith.constant dense<0.000000e+00> : vector<1x16xf32>
    %87 = tpu.matmul %37, %83, %cst_33 {dimension_numbers = #tpu.dot_dimension_numbers<[1], [1], [0], [0], [0, 0, 1, 0], [], []>} : vector<1x16xf32>, vector<16x16xf32>, vector<1x16xf32> -> vector<1x16xf32>
    %88 = arith.addf %44, %85 : vector<1x16xf32>
    %89 = arith.addf %88, %86 : vector<1x16xf32>
    %90 = arith.addf %89, %87 : vector<1x16xf32>
    %cst_34 = arith.constant 0.000000e+00 : f32
    %91 = vector.broadcast %cst_34 : f32 to vector<1x16xf32>
    %92 = arith.cmpf ogt, %90, %91 : vector<1x16xf32>
    %cst_35 = arith.constant 0.000000e+00 : f32
    %93 = vector.broadcast %cst_35 : f32 to vector<1x16xf32>
    %94 = arith.minimumf %90, %93 : vector<1x16xf32>
    %95 = math.exp %94 : vector<1x16xf32>
    %cst_36 = arith.constant 1.000000e+00 : f32
    %96 = vector.broadcast %cst_36 : f32 to vector<1x16xf32>
    %97 = arith.subf %95, %96 : vector<1x16xf32>
    %98 = arith.select %92, %90, %97 : vector<1x16xi1>, vector<1x16xf32>
    %c0_37 = arith.constant 0 : index
    %c0_38 = arith.constant 0 : index
    %99 = vector.load %arg4[%c0_37, %c0_38] : memref<1x16xf32, #tpu.memory_space<vmem>>, vector<1x16xf32>
    tpu.vector_store %arg4[%c0_37, %c0_38], %98 {strides = array<i32>} : memref<1x16xf32, #tpu.memory_space<vmem>>, vector<1x16xf32>,
    return
  }
  func.func @transform_0(%arg0: i32) -> (i32, i32) {
    %c0_i32 = arith.constant 0 : i32
    %c0_i32_0 = arith.constant 0 : i32
    return %arg0, %c0_i32 : i32, i32
  }
  func.func @transform_1(%arg0: i32) -> (i32, i32) {
    %c0_i32 = arith.constant 0 : i32
    %c0_i32_0 = arith.constant 0 : i32
    %c0_i32_1 = arith.constant 0 : i32
    return %c0_i32, %c0_i32_0 : i32, i32
  }
  func.func @transform_2(%arg0: i32) -> (i32, i32) {
    %c0_i32 = arith.constant 0 : i32
    %c0_i32_0 = arith.constant 0 : i32
    %c0_i32_1 = arith.constant 0 : i32
    return %c0_i32, %c0_i32_0 : i32, i32
  }
  func.func @transform_3(%arg0: i32) -> (i32, i32) {
    %c0_i32 = arith.constant 0 : i32
    %c0_i32_0 = arith.constant 0 : i32
    return %c0_i32, %arg0 : i32, i32
  }
}

</mosaic_0001>

<llo_original>
// kernel: xdeepfm_forward.1
$region0: #{xdeepfm_forward.1}
  #allocation0 [shape = 'u32[]', space=smem, size = 0x4, offset = 0x4, fixed_abs, tag = 'smem constant byte address 0x4 - core index']
  #allocation1 [shape = 'u32[144,128]{1,0:T(1,128)}', space=vmem, size = 0x12000, scoped, tag = 'internal scratch']
  %s0 = inlined_call_operand.vmem [shape: s32[16,4], index: 0, kind: input, shape index: {}]
  %s1 = inlined_call_operand.hbm [shape: f32[504,128], index: 1, kind: input, shape index: {}]
  %s2 = inlined_call_operand.hbm [shape: f32[264,512], index: 2, kind: input, shape index: {}]
  %s3 = inlined_call_operand.hbm [shape: f32[1,16], index: 3, kind: output, shape index: {}]
  %s4 = sld [smem:[#allocation0]]
  $region30: #{xdeepfm_forward.1} parent=0
    _
  %s6 = ssub.s32 1, %s4
  %s7 = scalar_select 0, %s6, %s4
  $region1: #{xdeepfm_forward.1} parent=0
    #allocation2 [shape = 'u8[258048]{0}', space=vmem, size = 0x3f000, scoped, tag = 'input window, operand 1, single buffered']
    #allocation3 [shape = 's32[1]{0}', space=sflag, size = 0x4, scoped, tag = 'scoped memory for xdeepfm_forward.1']
    #allocation4 [shape = 's32[1]{0}', space=sflag, size = 0x4, scoped, tag = 'scoped memory for xdeepfm_forward.1']
    #allocation5 [shape = 'u8[540672]{0}', space=vmem, size = 0x84000, scoped, tag = 'input window, operand 2, single buffered']
    #allocation6 [shape = 's32[1]{0}', space=sflag, size = 0x4, scoped, tag = 'scoped memory for xdeepfm_forward.1']
    #allocation7 [shape = 'u8[512]{0}', space=vmem, size = 0x400, scoped, tag = 'output window, operand 0, single buffered']
    %8 = vsyncpa [#allocation3], 0
    %9 = vsyncpa [#allocation6], 0
    %10 = vsyncpa [#allocation4], 0
    // Predicated region
    $region2: #{xdeepfm_forward.1} parent=1 // pred_check
      _
    $region3: #{xdeepfm_forward.1} parent=1 // pred_check_branch
      %12 = sbr.rel (0) target = $region5
    $region4: #{xdeepfm_forward.1} parent=1 // pred_region
      _
    $region5: #{xdeepfm_forward.1} parent=1 // pred_fallthru
      _
    // Predicated region
    $region6: #{xdeepfm_forward.1} parent=1 // pred_check
      _
    $region7: #{xdeepfm_forward.1} parent=1 // pred_check_branch
      %14 = sbr.rel (0) target = $region9
    $region8: #{xdeepfm_forward.1} parent=1 // pred_region
      %s16 = ssub.s32 8064, 8064
      %17 = vsyncadd [#allocation3], %s16
      %s18 = sshll.u32 [#allocation2], 4
      %s19 = int_to_ptr.vmem [resolvable:$true] %s18
      %24 = dma.hbm_to_vmem [thread:$0]  %s1, 8064, %s19, [#allocation3], 128, 128, 8
    $region9: #{xdeepfm_forward.1} parent=1 // pred_fallthru
      _
    // Predicated region
    $region10: #{xdeepfm_forward.1} parent=1 // pred_check
      _
    $region11: #{xdeepfm_forward.1} parent=1 // pred_check_branch
      %26 = sbr.rel (0) target = $region13
    $region12: #{xdeepfm_forward.1} parent=1 // pred_region
      %s28 = ssub.s32 16896, 16896
      %29 = vsyncadd [#allocation6], %s28
      %s30 = sshll.u32 [#allocation5], 4
      %s31 = int_to_ptr.vmem [resolvable:$true] %s30
      %36 = dma.hbm_to_vmem [thread:$0]  %s2, 16896, %s31, [#allocation6], 512, 512, 32
    $region13: #{xdeepfm_forward.1} parent=1 // pred_fallthru
      _
    // Predicated region
    $region14: #{xdeepfm_forward.1} parent=1 // pred_check
      _
    $region15: #{xdeepfm_forward.1} parent=1 // pred_check_branch
      %38 = sbr.rel (0) target = $region17
    $region16: #{xdeepfm_forward.1} parent=1 // pred_region
      %39 = dma.done [#allocation3], 8064
    $region17: #{xdeepfm_forward.1} parent=1 // pred_fallthru
      _
    // Predicated region
    $region18: #{xdeepfm_forward.1} parent=1 // pred_check
      _
    $region19: #{xdeepfm_forward.1} parent=1 // pred_check_branch
      %41 = sbr.rel (0) target = $region21
    $region20: #{xdeepfm_forward.1} parent=1 // pred_region
      %42 = dma.done [#allocation6], 16896
    $region21: #{xdeepfm_forward.1} parent=1 // pred_fallthru
      _
    %v43 = vld [vmem:[%s0] sm:$0xff]
    %v44 = vld [vmem:[%s0 + $0x8] sm:$0xff]
    %v45 = vlaneseq
    %v46 = vand.u32 %v45, 127
    %v47 = vadd.s32 %v46, 128
    %v48 = vadd.s32 %v46, 256
    %v49 = vadd.s32 %v46, 384
    %50 = vset.pattern.permute.xlu0 0
    %51 = vperm.xlu0 %50, %v43
    %v52 = vpop.permute.xlu0 %51
    %53 = vset.pattern.permute.xlu0 0
    %54 = vperm.xlu0 %53, %v44
    %v55 = vpop.permute.xlu0 %54
    %vm56 = vcmp.eq.s32.totalorder %v46, %v52
    %vm57 = vcmp.eq.s32.totalorder %v47, %v52
    %vm58 = vcmp.eq.s32.totalorder %v48, %v52
    %vm59 = vcmp.eq.s32.totalorder %v49, %v52
    %vm60 = vcmp.eq.s32.totalorder %v46, %v55
    %vm61 = vcmp.eq.s32.totalorder %v47, %v55
    %vm62 = vcmp.eq.s32.totalorder %v48, %v55
    %vm63 = vcmp.eq.s32.totalorder %v49, %v55
    %v64 = vadd.s32 %v43, 110
    %v65 = vadd.s32 %v44, 110
    %66 = vset.pattern.permute.xlu0 1
    %67 = vperm.xlu0 %66, %v64
    %v68 = vpop.permute.xlu0 %67
    %69 = vset.pattern.permute.xlu0 1
    %70 = vperm.xlu0 %69, %v65
    %v71 = vpop.permute.xlu0 %70
    %vm72 = vcmp.eq.s32.totalorder %v46, %v68
    %vm73 = vcmp.eq.s32.totalorder %v47, %v68
    %vm74 = vcmp.eq.s32.totalorder %v48, %v68
    %vm75 = vcmp.eq.s32.totalorder %v49, %v68
    %vm76 = vcmp.eq.s32.totalorder %v46, %v71
    %vm77 = vcmp.eq.s32.totalorder %v47, %v71
    %vm78 = vcmp.eq.s32.totalorder %v48, %v71
    %vm79 = vcmp.eq.s32.totalorder %v49, %v71
    %vm80 = vmor %vm56, %vm72
    %vm81 = vmor %vm57, %vm73
    %vm82 = vmor %vm58, %vm74
    %vm83 = vmor %vm59, %vm75
    %vm84 = vmor %vm60, %vm76
    %vm85 = vmor %vm61, %vm77
    %vm86 = vmor %vm62, %vm78
    %vm87 = vmor %vm63, %vm79
    %v88 = vadd.s32 %v43, 230
    %v89 = vadd.s32 %v44, 230
    %90 = vset.pattern.permute.xlu0 2
    %91 = vperm.xlu0 %90, %v88
    %v92 = vpop.permute.xlu0 %91
    %93 = vset.pattern.permute.xlu0 2
    %94 = vperm.xlu0 %93, %v89
    %v95 = vpop.permute.xlu0 %94
    %vm96 = vcmp.eq.s32.totalorder %v46, %v92
    %vm97 = vcmp.eq.s32.totalorder %v47, %v92
    %vm98 = vcmp.eq.s32.totalorder %v48, %v92
    %vm99 = vcmp.eq.s32.totalorder %v49, %v92
    %vm100 = vcmp.eq.s32.totalorder %v46, %v95
    %vm101 = vcmp.eq.s32.totalorder %v47, %v95
    %vm102 = vcmp.eq.s32.totalorder %v48, %v95
    %vm103 = vcmp.eq.s32.totalorder %v49, %v95
    %vm104 = vmor %vm80, %vm96
    %vm105 = vmor %vm81, %vm97
    %vm106 = vmor %vm82, %vm98
    %vm107 = vmor %vm83, %vm99
    %vm108 = vmor %vm84, %vm100
    %vm109 = vmor %vm85, %vm101
    %vm110 = vmor %vm86, %vm102
    %vm111 = vmor %vm87, %vm103
    %v112 = vadd.s32 %v43, 360
    %v113 = vadd.s32 %v44, 360
    %114 = vset.pattern.permute.xlu0 3
    %115 = vperm.xlu0 %114, %v112
    %v116 = vpop.permute.xlu0 %115
    %117 = vset.pattern.permute.xlu0 3
    %118 = vperm.xlu0 %117, %v113
    %v119 = vpop.permute.xlu0 %118
    %vm120 = vcmp.eq.s32.totalorder %v46, %v116
    %vm121 = vcmp.eq.s32.totalorder %v47, %v116
    %vm122 = vcmp.eq.s32.totalorder %v48, %v116
    %vm123 = vcmp.eq.s32.totalorder %v49, %v116
    %vm124 = vcmp.eq.s32.totalorder %v46, %v119
    %vm125 = vcmp.eq.s32.totalorder %v47, %v119
    %vm126 = vcmp.eq.s32.totalorder %v48, %v119
    %vm127 = vcmp.eq.s32.totalorder %v49, %v119
    %vm128 = vmor %vm104, %vm120
    %vm129 = vmor %vm105, %vm121
    %vm130 = vmor %vm106, %vm122
    %vm131 = vmor %vm107, %vm123
    %vm132 = vmor %vm108, %vm124
    %vm133 = vmor %vm109, %vm125
    %vm134 = vmor %vm110, %vm126
    %vm135 = vmor %vm111, %vm127
    %v136 = vsel %vm128, 1.0, 0.0
    %v137 = vsel %vm129, 1.0, 0.0
    %v138 = vsel %vm130, 1.0, 0.0
    %v139 = vsel %vm131, 1.0, 0.0
    %v140 = vsel %vm132, 1.0, 0.0
    %v141 = vsel %vm133, 1.0, 0.0
    %v142 = vsel %vm134, 1.0, 0.0
    %v143 = vsel %vm135, 1.0, 0.0
    %v144 = vld [vmem:[#allocation2] sm:$0xff]
    %v145 = vld [vmem:[#allocation2 + $0x8] sm:$0xff]
    %v146 = vld [vmem:[#allocation2 + $0x10] sm:$0xff]
    %v147 = vld [vmem:[#allocation2 + $0x18] sm:$0xff]
    %v148 = vld [vmem:[#allocation2 + $0x20] sm:$0xff]
    %v149 = vld [vmem:[#allocation2 + $0x28] sm:$0xff]
    %v150 = vld [vmem:[#allocation2 + $0x30] sm:$0xff]
    %v151 = vld [vmem:[#allocation2 + $0x38] sm:$0xff]
    %v152 = vld [vmem:[#allocation2 + $0x40] sm:$0xff]
    %v153 = vld [vmem:[#allocation2 + $0x48] sm:$0xff]
    %v154 = vld [vmem:[#allocation2 + $0x50] sm:$0xff]
    %v155 = vld [vmem:[#allocation2 + $0x58] sm:$0xff]
    %v156 = vld [vmem:[#allocation2 + $0x60] sm:$0xff]
    %v157 = vld [vmem:[#allocation2 + $0x68] sm:$0xff]
    %v158 = vld [vmem:[#allocation2 + $0x70] sm:$0xff]
    %v159 = vld [vmem:[#allocation2 + $0x78] sm:$0xff]
    %v160 = vld [vmem:[#allocation2 + $0x80] sm:$0xff]
    %v161 = vld [vmem:[#allocation2 + $0x88] sm:$0xff]
    %v162 = vld [vmem:[#allocation2 + $0x90] sm:$0xff]
    %v163 = vld [vmem:[#allocation2 + $0x98] sm:$0xff]
    %v164 = vld [vmem:[#allocation2 + $0xa0] sm:$0xff]
    %v165 = vld [vmem:[#allocation2 + $0xa8] sm:$0xff]
    %v166 = vld [vmem:[#allocation2 + $0xb0] sm:$0xff]
    %v167 = vld [vmem:[#allocation2 + $0xb8] sm:$0xff]
    %v168 = vld [vmem:[#allocation2 + $0xc0] sm:$0xff]
    %v169 = vld [vmem:[#allocation2 + $0xc8] sm:$0xff]
    %v170 = vld [vmem:[#allocation2 + $0xd0] sm:$0xff]
    %v171 = vld [vmem:[#allocation2 + $0xd8] sm:$0xff]
    %v172 = vld [vmem:[#allocation2 + $0xe0] sm:$0xff]
    %v173 = vld [vmem:[#allocation2 + $0xe8] sm:$0xff]
    %v174 = vld [vmem:[#allocation2 + $0xf0] sm:$0xff]
    %v175 = vld [vmem:[#allocation2 + $0xf8] sm:$0xff]
    %v176 = vld [vmem:[#allocation2 + $0x100] sm:$0xff]
    %v177 = vld [vmem:[#allocation2 + $0x108] sm:$0xff]
    %v178 = vld [vmem:[#allocation2 + $0x110] sm:$0xff]
    %v179 = vld [vmem:[#allocation2 + $0x118] sm:$0xff]
    %v180 = vld [vmem:[#allocation2 + $0x120] sm:$0xff]
    %v181 = vld [vmem:[#allocation2 + $0x128] sm:$0xff]
    %v182 = vld [vmem:[#allocation2 + $0x130] sm:$0xff]
    %v183 = vld [vmem:[#allocation2 + $0x138] sm:$0xff]
    %v184 = vld [vmem:[#allocation2 + $0x140] sm:$0xff]
    %v185 = vld [vmem:[#allocation2 + $0x148] sm:$0xff]
    %v186 = vld [vmem:[#allocation2 + $0x150] sm:$0xff]
    %v187 = vld [vmem:[#allocation2 + $0x158] sm:$0xff]
    %v188 = vld [vmem:[#allocation2 + $0x160] sm:$0xff]
    %v189 = vld [vmem:[#allocation2 + $0x168] sm:$0xff]
    %v190 = vld [vmem:[#allocation2 + $0x170] sm:$0xff]
    %v191 = vld [vmem:[#allocation2 + $0x178] sm:$0xff]
    %v192 = vld [vmem:[#allocation2 + $0x180] sm:$0xff]
    %v193 = vld [vmem:[#allocation2 + $0x188] sm:$0xff]
    %v194 = vld [vmem:[#allocation2 + $0x190] sm:$0xff]
    %v195 = vld [vmem:[#allocation2 + $0x198] sm:$0xff]
    %v196 = vld [vmem:[#allocation2 + $0x1a0] sm:$0xff]
    %v197 = vld [vmem:[#allocation2 + $0x1a8] sm:$0xff]
    %v198 = vld [vmem:[#allocation2 + $0x1b0] sm:$0xff]
    %v199 = vld [vmem:[#allocation2 + $0x1b8] sm:$0xff]
    %v200 = vld [vmem:[#allocation2 + $0x1c0] sm:$0xff]
    %v201 = vld [vmem:[#allocation2 + $0x1c8] sm:$0xff]
    %v202 = vld [vmem:[#allocation2 + $0x1d0] sm:$0xff]
    %v203 = vld [vmem:[#allocation2 + $0x1d8] sm:$0xff]
    %v204 = vld [vmem:[#allocation2 + $0x1e0] sm:$0xff]
    %v205 = vld [vmem:[#allocation2 + $0x1e8] sm:$0xff]
    %v206 = vld [vmem:[#allocation2 + $0x1f0] sm:$0x1]
    %v207 = vld [vmem:[#allocation2 + $0x1f1] sm:$0x1]
    %v208 = vld [vmem:[#allocation2 + $0x1f2] sm:$0x1]
    %v209 = vld [vmem:[#allocation2 + $0x1f3] sm:$0x1]
    %v210 = vld [vmem:[#allocation2 + $0x1f4] sm:$0x1]
    %v211 = vld [vmem:[#allocation2 + $0x1f5] sm:$0x1]
    %v212 = vld [vmem:[#allocation2 + $0x1f6] sm:$0x1]
    %v213 = vld [vmem:[#allocation5] sm:$0xff]
    %v214 = vld [vmem:[#allocation5 + $0x8] sm:$0xff]
    %v215 = vld [vmem:[#allocation5 + $0x10] sm:$0xff]
    %v216 = vld [vmem:[#allocation5 + $0x18] sm:$0xff]
    %v217 = vld [vmem:[#allocation5 + $0x20] sm:$0xff]
    %v218 = vld [vmem:[#allocation5 + $0x28] sm:$0xff]
    %v219 = vld [vmem:[#allocation5 + $0x30] sm:$0xff]
    %v220 = vld [vmem:[#allocation5 + $0x38] sm:$0xff]
    %v221 = vld [vmem:[#allocation5 + $0x40] sm:$0xff]
    %v222 = vld [vmem:[#allocation5 + $0x48] sm:$0xff]
    %v223 = vld [vmem:[#allocation5 + $0x50] sm:$0xff]
    %v224 = vld [vmem:[#allocation5 + $0x58] sm:$0xff]
    %v225 = vld [vmem:[#allocation5 + $0x60] sm:$0xff]
    %v226 = vld [vmem:[#allocation5 + $0x68] sm:$0xff]
    %v227 = vld [vmem:[#allocation5 + $0x70] sm:$0xff]
    %v228 = vld [vmem:[#allocation5 + $0x78] sm:$0xff]
    %v229 = vld [vmem:[#allocation5 + $0x80] sm:$0xff]
    %v230 = vld [vmem:[#allocation5 + $0x88] sm:$0xff]
    %v231 = vld [vmem:[#allocation5 + $0x90] sm:$0xff]
    %v232 = vld [vmem:[#allocation5 + $0x98] sm:$0xff]
    %v233 = vld [vmem:[#allocation5 + $0xa0] sm:$0xff]
    %v234 = vld [vmem:[#allocation5 + $0xa8] sm:$0xff]
    %v235 = vld [vmem:[#allocation5 + $0xb0] sm:$0xff]
    %v236 = vld [vmem:[#allocation5 + $0xb8] sm:$0xff]
    %v237 = vld [vmem:[#allocation5 + $0xc0] sm:$0xff]
    %v238 = vld [vmem:[#allocation5 + $0xc8] sm:$0xff]
    %v239 = vld [vmem:[#allocation5 + $0xd0] sm:$0xff]
    %v240 = vld [vmem:[#allocation5 + $0xd8] sm:$0xff]
    %v241 = vld [vmem:[#allocation5 + $0xe0] sm:$0xff]
    %v242 = vld [vmem:[#allocation5 + $0xe8] sm:$0xff]
    %v243 = vld [vmem:[#allocation5 + $0xf0] sm:$0xff]
    %v244 = vld [vmem:[#allocation5 + $0xf8] sm:$0xff]
    %v245 = vld [vmem:[#allocation5 + $0x100] sm:$0xff]
    %v246 = vld [vmem:[#allocation5 + $0x108] sm:$0xff]
    %v247 = vld [vmem:[#allocation5 + $0x110] sm:$0xff]
    %v248 = vld [vmem:[#allocation5 + $0x118] sm:$0xff]
    %v249 = vld [vmem:[#allocation5 + $0x120] sm:$0xff]
    %v250 = vld [vmem:[#allocation5 + $0x128] sm:$0xff]
    %v251 = vld [vmem:[#allocation5 + $0x130] sm:$0xff]
    %v252 = vld [vmem:[#allocation5 + $0x138] sm:$0xff]
    %v253 = vld [vmem:[#allocation5 + $0x140] sm:$0xff]
    %v254 = vld [vmem:[#allocation5 + $0x148] sm:$0xff]
    %v255 = vld [vmem:[#allocation5 + $0x150] sm:$0xff]
    %v256 = vld [vmem:[#allocation5 + $0x158] sm:$0xff]
    %v257 = vld [vmem:[#allocation5 + $0x160] sm:$0xff]
    %v258 = vld [vmem:[#allocation5 + $0x168] sm:$0xff]
    %v259 = vld [vmem:[#allocation5 + $0x170] sm:$0xff]
    %v260 = vld [vmem:[#allocation5 + $0x178] sm:$0xff]
    %v261 = vld [vmem:[#allocation5 + $0x180] sm:$0xff]
    %v262 = vld [vmem:[#allocation5 + $0x188] sm:$0xff]
    %v263 = vld [vmem:[#allocation5 + $0x190] sm:$0xff]
    %v264 = vld [vmem:[#allocation5 + $0x198] sm:$0xff]
    %v265 = vld [vmem:[#allocation5 + $0x1a0] sm:$0xff]
    %v266 = vld [vmem:[#allocation5 + $0x1a8] sm:$0xff]
    %v267 = vld [vmem:[#allocation5 + $0x1b0] sm:$0xff]
    %v268 = vld [vmem:[#allocation5 + $0x1b8] sm:$0xff]
    %v269 = vld [vmem:[#allocation5 + $0x1c0] sm:$0xff]
    %v270 = vld [vmem:[#allocation5 + $0x1c8] sm:$0xff]
    %v271 = vld [vmem:[#allocation5 + $0x1d0] sm:$0xff]
    %v272 = vld [vmem:[#allocation5 + $0x1d8] sm:$0xff]
    %v273 = vld [vmem:[#allocation5 + $0x1e0] sm:$0xff]
    %v274 = vld [vmem:[#allocation5 + $0x1e8] sm:$0xff]
    %v275 = vld [vmem:[#allocation5 + $0x1f0] sm:$0xff]
    %v276 = vld [vmem:[#allocation5 + $0x1f8] sm:$0xff]
    %v277 = vld [vmem:[#allocation5 + $0x200] sm:$0xff]
    %v278 = vld [vmem:[#allocation5 + $0x208] sm:$0xff]
    %v279 = vld [vmem:[#allocation5 + $0x220] sm:$0xff]
    %v280 = vld [vmem:[#allocation5 + $0x228] sm:$0xff]
    %v281 = vld [vmem:[#allocation5 + $0x240] sm:$0xff]
    %v282 = vld [vmem:[#allocation5 + $0x248] sm:$0xff]
    %v283 = vld [vmem:[#allocation5 + $0x260] sm:$0xff]
    %v284 = vld [vmem:[#allocation5 + $0x268] sm:$0xff]
    %v285 = vld [vmem:[#allocation5 + $0x280] sm:$0xff]
    %v286 = vld [vmem:[#allocation5 + $0x288] sm:$0xff]
    %v287 = vld [vmem:[#allocation5 + $0x2a0] sm:$0xff]
    %v288 = vld [vmem:[#allocation5 + $0x2a8] sm:$0xff]
    %v289 = vld [vmem:[#allocation5 + $0x2c0] sm:$0xff]
    %v290 = vld [vmem:[#allocation5 + $0x2c8] sm:$0xff]
    %v291 = vld [vmem:[#allocation5 + $0x2e0] sm:$0xff]
    %v292 = vld [vmem:[#allocation5 + $0x2e8] sm:$0xff]
    %v293 = vld [vmem:[#allocation5 + $0x300] sm:$0xff]
    %v294 = vld [vmem:[#allocation5 + $0x308] sm:$0xff]
    %v295 = vld [vmem:[#allocation5 + $0x320] sm:$0xff]
    %v296 = vld [vmem:[#allocation5 + $0x328] sm:$0xff]
    %v297 = vld [vmem:[#allocation5 + $0x340] sm:$0xff]
    %v298 = vld [vmem:[#allocation5 + $0x348] sm:$0xff]
    %v299 = vld [vmem:[#allocation5 + $0x360] sm:$0xff]
    %v300 = vld [vmem:[#allocation5 + $0x368] sm:$0xff]
    %v301 = vld [vmem:[#allocation5 + $0x380] sm:$0xff]
    %v302 = vld [vmem:[#allocation5 + $0x388] sm:$0xff]
    %v303 = vld [vmem:[#allocation5 + $0x3a0] sm:$0xff]
    %v304 = vld [vmem:[#allocation5 + $0x3a8] sm:$0xff]
    %v305 = vld [vmem:[#allocation5 + $0x3c0] sm:$0xff]
    %v306 = vld [vmem:[#allocation5 + $0x3c8] sm:$0xff]
    %v307 = vld [vmem:[#allocation5 + $0x3e0] sm:$0xff]
    %v308 = vld [vmem:[#allocation5 + $0x3e8] sm:$0xff]
    %s309 = scalar_lea.vmem [#allocation5], 1024
    %v310 = vld [vmem:[%s309] ss:$8 sm:$0xf]
    %vm311 = vcmask 130048
    %v313 = vsel %vm311, %v139, 0
    %v316 = vsel %vm311, %v143, 0
    %318 = vmatprep.subr.mxu0 0.0
    %319 = vmatpush1.msra.mxu0 %v144
    %320 = vmatprep.subr.mxu0 0.0
    %321 = vmatpush1.msra.mxu0 %v145
    %322 = vmatprep.subr.mxu0 0.0
    %323 = vmatpush1.msra.mxu0 %v146
    %324 = vmatprep.subr.mxu0 0.0
    %325 = vmatpush1.msra.mxu0 %v147
    %326 = vmatprep.subr.mxu0 0.0
    %327 = vmatpush1.msra.mxu0 %v148
    %328 = vmatprep.subr.mxu0 0.0
    %329 = vmatpush1.msra.mxu0 %v149
    %330 = vmatprep.subr.mxu0 0.0
    %331 = vmatpush1.msra.mxu0 %v150
    %332 = vmatprep.subr.mxu0 0.0
    %333 = vmatpush1.msra.mxu0 %v151
    %334 = vmatprep.subr.mxu0 0.0
    %335 = vmatpush1.msra.mxu0 %v152
    %336 = vmatprep.subr.mxu0 0.0
    %337 = vmatpush1.msra.mxu0 %v153
    %338 = vmatprep.subr.mxu0 0.0
    %339 = vmatpush1.msra.mxu0 %v154
    %340 = vmatprep.subr.mxu0 0.0
    %341 = vmatpush1.msra.mxu0 %v155
    %342 = vmatprep.subr.mxu0 0.0
    %343 = vmatpush1.msra.mxu0 %v156
    %344 = vmatprep.subr.mxu0 0.0
    %345 = vmatpush1.msra.mxu0 %v157
    %346 = vmatprep.subr.mxu0 0.0
    %347 = vmatpush1.msra.mxu0 %v158
    %348 = vmatprep.subr.mxu0 0.0
    %349 = vmatpush1.msra.mxu0 %v159
    %350 = vmatprep.subr.mxu0 0.0
    %351 = vmatpush1.msra.mxu0 %v160
    %352 = vmatprep.subr.mxu0 0.0
    %353 = vmatpush1.msra.mxu0 %v161
    %354 = vmatprep.subr.mxu0 0.0
    %355 = vmatpush1.msra.mxu0 %v162
    %356 = vmatprep.subr.mxu0 0.0
    %357 = vmatpush1.msra.mxu0 %v163
    %358 = vmatprep.subr.mxu0 0.0
    %359 = vmatpush1.msra.mxu0 %v164
    %360 = vmatprep.subr.mxu0 0.0
    %361 = vmatpush1.msra.mxu0 %v165
    %362 = vmatprep.subr.mxu0 0.0
    %363 = vmatpush1.msra.mxu0 %v166
    %364 = vmatprep.subr.mxu0 0.0
    %365 = vmatpush1.msra.mxu0 %v167
    %366 = vmatprep.subr.mxu0 0.0
    %367 = vmatpush1.msra.mxu0 %v168
    %368 = vmatprep.subr.mxu0 0.0
    %369 = vmatpush1.msra.mxu0 %v169
    %370 = vmatprep.subr.mxu0 0.0
    %371 = vmatpush1.msra.mxu0 %v170
    %372 = vmatprep.subr.mxu0 0.0
    %373 = vmatpush1.msra.mxu0 %v171
    %374 = vmatprep.subr.mxu0 0.0
    %375 = vmatpush1.msra.mxu0 %v172
    %376 = vmatprep.subr.mxu0 0.0
    %377 = vmatpush1.msra.mxu0 %v173
    %378 = vmatprep.subr.mxu0 0.0
    %379 = vmatpush1.msra.mxu0 %v174
    %380 = vmatprep.subr.mxu0 0.0
    %381 = vmatpush1.msra.mxu0 %v175
    %382 = vmatprep.mubr.f32.mxu0 %v137
    %383 = vmatmul.mubr.f32.gmra.mrb[0].mxu0 %v136
    %v384 = vpop.f32.mrb[0].mxu0
    %v385 = vadd.f32 0.0, %v384
    %v386 = vpop.f32.mrb[0].mxu0
    %387 = vmatprep.mubr.f32.mxu0 %v141
    %388 = vmatmul.mubr.f32.gmra.mrb[0].mxu0 %v140
    %v389 = vpop.f32.mrb[0].mxu0
    %v390 = vadd.f32 0.0, %v389
    %v391 = vpop.f32.mrb[0].mxu0
    %392 = vdwg.mxu0
    %393 = vmatprep.subr.mxu0 0.0
    %394 = vmatpush1.msra.mxu0 %v176
    %395 = vmatprep.subr.mxu0 0.0
    %396 = vmatpush1.msra.mxu0 %v177
    %397 = vmatprep.subr.mxu0 0.0
    %398 = vmatpush1.msra.mxu0 %v178
    %399 = vmatprep.subr.mxu0 0.0
    %400 = vmatpush1.msra.mxu0 %v179
    %401 = vmatprep.subr.mxu0 0.0
    %402 = vmatpush1.msra.mxu0 %v180
    %403 = vmatprep.subr.mxu0 0.0
    %404 = vmatpush1.msra.mxu0 %v181
    %405 = vmatprep.subr.mxu0 0.0
    %406 = vmatpush1.msra.mxu0 %v182
    %407 = vmatprep.subr.mxu0 0.0
    %408 = vmatpush1.msra.mxu0 %v183
    %409 = vmatprep.subr.mxu0 0.0
    %410 = vmatpush1.msra.mxu0 %v184
    %411 = vmatprep.subr.mxu0 0.0
    %412 = vmatpush1.msra.mxu0 %v185
    %413 = vmatprep.subr.mxu0 0.0
    %414 = vmatpush1.msra.mxu0 %v186
    %415 = vmatprep.subr.mxu0 0.0
    %416 = vmatpush1.msra.mxu0 %v187
    %417 = vmatprep.subr.mxu0 0.0
    %418 = vmatpush1.msra.mxu0 %v188
    %419 = vmatprep.subr.mxu0 0.0
    %420 = vmatpush1.msra.mxu0 %v189
    %421 = vmatprep.subr.mxu0 0.0
    %422 = vmatpush1.msra.mxu0 %v190
    %423 = vmatprep.subr.mxu0 0.0
    %424 = vmatpush1.msra.mxu0 %v191
    %425 = vmatprep.subr.mxu0 0.0
    %426 = vmatpush1.msra.mxu0 %v192
    %427 = vmatprep.subr.mxu0 0.0
    %428 = vmatpush1.msra.mxu0 %v193
    %429 = vmatprep.subr.mxu0 0.0
    %430 = vmatpush1.msra.mxu0 0.0
    %431 = vmatprep.subr.mxu0 0.0
    %432 = vmatpush1.msra.mxu0 0.0
    %433 = vmatprep.subr.mxu0 0.0
    %434 = vmatpush1.msra.mxu0 0.0
    %435 = vmatprep.subr.mxu0 0.0
    %436 = vmatpush1.msra.mxu0 0.0
    %437 = vmatprep.subr.mxu0 0.0
    %438 = vmatpush1.msra.mxu0 0.0
    %439 = vmatprep.subr.mxu0 0.0
    %440 = vmatpush1.msra.mxu0 0.0
    %441 = vmatprep.subr.mxu0 0.0
    %442 = vmatpush1.msra.mxu0 0.0
    %443 = vmatprep.subr.mxu0 0.0
    %444 = vmatpush1.msra.mxu0 0.0
    %445 = vmatprep.subr.mxu0 0.0
    %446 = vmatpush1.msra.mxu0 0.0
    %447 = vmatprep.subr.mxu0 0.0
    %448 = vmatpush1.msra.mxu0 0.0
    %449 = vmatprep.subr.mxu0 0.0
    %450 = vmatpush1.msra.mxu0 0.0
    %451 = vmatprep.subr.mxu0 0.0
    %452 = vmatpush1.msra.mxu0 0.0
    %453 = vmatprep.subr.mxu0 0.0
    %454 = vmatpush1.msra.mxu0 0.0
    %455 = vmatprep.subr.mxu0 0.0
    %456 = vmatpush1.msra.mxu0 0.0
    %457 = vmatprep.mubr.f32.mxu0 %v313
    %458 = vmatmul.mubr.f32.gmra.mrb[0].mxu0 %v138
    %v459 = vpop.f32.mrb[0].mxu0
    %v460 = vadd.f32 %v385, %v459
    %v461 = vpop.f32.mrb[0].mxu0
    %462 = vmatprep.mubr.f32.mxu0 %v316
    %463 = vmatmul.mubr.f32.gmra.mrb[0].mxu0 %v142
    %v464 = vpop.f32.mrb[0].mxu0
    %v465 = vadd.f32 %v390, %v464
    %v466 = vpop.f32.mrb[0].mxu0
    %467 = vdwg.mxu0
    %vm468 = vcmask 523264
    %v470 = vsel %vm468, %v460, 0
    %v473 = vsel %vm468, %v465, 0
    %475 = vmatprep.subr.mxu0 %v214
    %476 = vmatpush1.msra.mxu0 %v213
    %477 = vmatprep.subr.mxu0 %v218
    %478 = vmatpush1.msra.mxu0 %v217
    %479 = vmatprep.subr.mxu0 %v222
    %480 = vmatpush1.msra.mxu0 %v221
    %481 = vmatprep.subr.mxu0 %v226
    %482 = vmatpush1.msra.mxu0 %v225
    %483 = vmatprep.subr.mxu0 %v230
    %484 = vmatpush1.msra.mxu0 %v229
    %485 = vmatprep.subr.mxu0 %v234
    %486 = vmatpush1.msra.mxu0 %v233
    %487 = vmatprep.subr.mxu0 %v238
    %488 = vmatpush1.msra.mxu0 %v237
    %489 = vmatprep.subr.mxu0 %v242
    %490 = vmatpush1.msra.mxu0 %v241
    %491 = vmatprep.subr.mxu0 0.0
    %492 = vmatpush1.msra.mxu0 0.0
    %493 = vmatprep.subr.mxu0 0.0
    %494 = vmatpush1.msra.mxu0 0.0
    %495 = vmatprep.subr.mxu0 0.0
    %496 = vmatpush1.msra.mxu0 0.0
    %497 = vmatprep.subr.mxu0 0.0
    %498 = vmatpush1.msra.mxu0 0.0
    %499 = vmatprep.subr.mxu0 0.0
    %500 = vmatpush1.msra.mxu0 0.0
    %501 = vmatprep.subr.mxu0 0.0
    %502 = vmatpush1.msra.mxu0 0.0
    %503 = vmatprep.subr.mxu0 0.0
    %504 = vmatpush1.msra.mxu0 0.0
    %505 = vmatprep.subr.mxu0 0.0
    %506 = vmatpush1.msra.mxu0 0.0
    %507 = vmatprep.subr.mxu0 0.0
    %508 = vmatpush1.msra.mxu0 0.0
    %509 = vmatprep.subr.mxu0 0.0
    %510 = vmatpush1.msra.mxu0 0.0
    %511 = vmatprep.subr.mxu0 0.0
    %512 = vmatpush1.msra.mxu0 0.0
    %513 = vmatprep.subr.mxu0 0.0
    %514 = vmatpush1.msra.mxu0 0.0
    %515 = vmatprep.subr.mxu0 0.0
    %516 = vmatpush1.msra.mxu0 0.0
    %517 = vmatprep.subr.mxu0 0.0
    %518 = vmatpush1.msra.mxu0 0.0
    %519 = vmatprep.subr.mxu0 0.0
    %520 = vmatpush1.msra.mxu0 0.0
    %521 = vmatprep.subr.mxu0 0.0
    %522 = vmatpush1.msra.mxu0 0.0
    %523 = vmatprep.subr.mxu0 0.0
    %524 = vmatpush1.msra.mxu0 0.0
    %525 = vmatprep.subr.mxu0 0.0
    %526 = vmatpush1.msra.mxu0 0.0
    %527 = vmatprep.subr.mxu0 0.0
    %528 = vmatpush1.msra.mxu0 0.0
    %529 = vmatprep.subr.mxu0 0.0
    %530 = vmatpush1.msra.mxu0 0.0
    %531 = vmatprep.subr.mxu0 0.0
    %532 = vmatpush1.msra.mxu0 0.0
    %533 = vmatprep.subr.mxu0 0.0
    %534 = vmatpush1.msra.mxu0 0.0
    %535 = vmatprep.subr.mxu0 0.0
    %536 = vmatpush1.msra.mxu0 0.0
    %537 = vmatprep.subr.mxu0 0.0
    %538 = vmatpush1.msra.mxu0 0.0
    %539 = vmatprep.mubr.f32.mxu0 0.0
    %540 = vmatmul.mubr.f32.gmra.mrb[0].mxu0 %v470
    %v541 = vpop.f32.mrb[0].mxu0
    %v542 = vadd.f32 0.0, %v541
    %v543 = vpop.f32.mrb[0].mxu0
    %v544 = vadd.f32 0.0, %v543
    %545 = vmatprep.mubr.f32.mxu0 0.0
    %546 = vmatmul.mubr.f32.gmra.mrb[0].mxu0 %v473
    %v547 = vpop.f32.mrb[0].mxu0
    %v548 = vadd.f32 0.0, %v547
    %v549 = vpop.f32.mrb[0].mxu0
    %v550 = vadd.f32 0.0, %v549
    %551 = vdwg.mxu0
    %552 = vmatprep.subr.mxu0 %v216
    %553 = vmatpush1.msra.mxu0 %v215
    %554 = vmatprep.subr.mxu0 %v220
    %555 = vmatpush1.msra.mxu0 %v219
    %556 = vmatprep.subr.mxu0 %v224
    %557 = vmatpush1.msra.mxu0 %v223
    %558 = vmatprep.subr.mxu0 %v228
    %559 = vmatpush1.msra.mxu0 %v227
    %560 = vmatprep.subr.mxu0 %v232
    %561 = vmatpush1.msra.mxu0 %v231
    %562 = vmatprep.subr.mxu0 %v236
    %563 = vmatpush1.msra.mxu0 %v235
    %564 = vmatprep.subr.mxu0 %v240
    %565 = vmatpush1.msra.mxu0 %v239
    %566 = vmatprep.subr.mxu0 %v244
    %567 = vmatpush1.msra.mxu0 %v243
    %568 = vmatprep.subr.mxu0 0.0
    %569 = vmatpush1.msra.mxu0 0.0
    %570 = vmatprep.subr.mxu0 0.0
    %571 = vmatpush1.msra.mxu0 0.0
    %572 = vmatprep.subr.mxu0 0.0
    %573 = vmatpush1.msra.mxu0 0.0
    %574 = vmatprep.subr.mxu0 0.0
    %575 = vmatpush1.msra.mxu0 0.0
    %576 = vmatprep.subr.mxu0 0.0
    %577 = vmatpush1.msra.mxu0 0.0
    %578 = vmatprep.subr.mxu0 0.0
    %579 = vmatpush1.msra.mxu0 0.0
    %580 = vmatprep.subr.mxu0 0.0
    %581 = vmatpush1.msra.mxu0 0.0
    %582 = vmatprep.subr.mxu0 0.0
    %583 = vmatpush1.msra.mxu0 0.0
    %584 = vmatprep.subr.mxu0 0.0
    %585 = vmatpush1.msra.mxu0 0.0
    %586 = vmatprep.subr.mxu0 0.0
    %587 = vmatpush1.msra.mxu0 0.0
    %588 = vmatprep.subr.mxu0 0.0
    %589 = vmatpush1.msra.mxu0 0.0
    %590 = vmatprep.subr.mxu0 0.0
    %591 = vmatpush1.msra.mxu0 0.0
    %592 = vmatprep.subr.mxu0 0.0
    %593 = vmatpush1.msra.mxu0 0.0
    %594 = vmatprep.subr.mxu0 0.0
    %595 = vmatpush1.msra.mxu0 0.0
    %596 = vmatprep.subr.mxu0 0.0
    %597 = vmatpush1.msra.mxu0 0.0
    %598 = vmatprep.subr.mxu0 0.0
    %599 = vmatpush1.msra.mxu0 0.0
    %600 = vmatprep.subr.mxu0 0.0
    %601 = vmatpush1.msra.mxu0 0.0
    %602 = vmatprep.subr.mxu0 0.0
    %603 = vmatpush1.msra.mxu0 0.0
    %604 = vmatprep.subr.mxu0 0.0
    %605 = vmatpush1.msra.mxu0 0.0
    %606 = vmatprep.subr.mxu0 0.0
    %607 = vmatpush1.msra.mxu0 0.0
    %608 = vmatprep.subr.mxu0 0.0
    %609 = vmatpush1.msra.mxu0 0.0
    %610 = vmatprep.subr.mxu0 0.0
    %611 = vmatpush1.msra.mxu0 0.0
    %612 = vmatprep.subr.mxu0 0.0
    %613 = vmatpush1.msra.mxu0 0.0
    %614 = vmatprep.subr.mxu0 0.0
    %615 = vmatpush1.msra.mxu0 0.0
    %616 = vmatprep.mubr.f32.mxu0 0.0
    %617 = vmatmul.mubr.f32.gmra.mrb[0].mxu0 %v470
    %v618 = vpop.f32.mrb[0].mxu0
    %v619 = vadd.f32 0.0, %v618
    %v620 = vpop.f32.mrb[0].mxu0
    %v621 = vadd.f32 0.0, %v620
    %622 = vmatprep.mubr.f32.mxu0 0.0
    %623 = vmatmul.mubr.f32.gmra.mrb[0].mxu0 %v473
    %v624 = vpop.f32.mrb[0].mxu0
    %v625 = vadd.f32 0.0, %v624
    %v626 = vpop.f32.mrb[0].mxu0
    %v627 = vadd.f32 0.0, %v626
    %628 = vdwg.mxu0
    %629 = vmatprep.subr.mxu0 %v246
    %630 = vmatpush1.msra.mxu0 %v245
    %631 = vmatprep.subr.mxu0 %v250
    %632 = vmatpush1.msra.mxu0 %v249
    %633 = vmatprep.subr.mxu0 %v254
    %634 = vmatpush1.msra.mxu0 %v253
    %635 = vmatprep.subr.mxu0 %v258
    %636 = vmatpush1.msra.mxu0 %v257
    %637 = vmatprep.subr.mxu0 %v262
    %638 = vmatpush1.msra.mxu0 %v261
    %639 = vmatprep.subr.mxu0 %v266
    %640 = vmatpush1.msra.mxu0 %v265
    %641 = vmatprep.subr.mxu0 %v270
    %642 = vmatpush1.msra.mxu0 %v269
    %643 = vmatprep.subr.mxu0 %v274
    %644 = vmatpush1.msra.mxu0 %v273
    %645 = vmatprep.subr.mxu0 0.0
    %646 = vmatpush1.msra.mxu0 0.0
    %647 = vmatprep.subr.mxu0 0.0
    %648 = vmatpush1.msra.mxu0 0.0
    %649 = vmatprep.subr.mxu0 0.0
    %650 = vmatpush1.msra.mxu0 0.0
    %651 = vmatprep.subr.mxu0 0.0
    %652 = vmatpush1.msra.mxu0 0.0
    %653 = vmatprep.subr.mxu0 0.0
    %654 = vmatpush1.msra.mxu0 0.0
    %655 = vmatprep.subr.mxu0 0.0
    %656 = vmatpush1.msra.mxu0 0.0
    %657 = vmatprep.subr.mxu0 0.0
    %658 = vmatpush1.msra.mxu0 0.0
    %659 = vmatprep.subr.mxu0 0.0
    %660 = vmatpush1.msra.mxu0 0.0
    %661 = vmatprep.subr.mxu0 0.0
    %662 = vmatpush1.msra.mxu0 0.0
    %663 = vmatprep.subr.mxu0 0.0
    %664 = vmatpush1.msra.mxu0 0.0
    %665 = vmatprep.subr.mxu0 0.0
    %666 = vmatpush1.msra.mxu0 0.0
    %667 = vmatprep.subr.mxu0 0.0
    %668 = vmatpush1.msra.mxu0 0.0
    %669 = vmatprep.subr.mxu0 0.0
    %670 = vmatpush1.msra.mxu0 0.0
    %671 = vmatprep.subr.mxu0 0.0
    %672 = vmatpush1.msra.mxu0 0.0
    %673 = vmatprep.subr.mxu0 0.0
    %674 = vmatpush1.msra.mxu0 0.0
    %675 = vmatprep.subr.mxu0 0.0
    %676 = vmatpush1.msra.mxu0 0.0
    %677 = vmatprep.subr.mxu0 0.0
    %678 = vmatpush1.msra.mxu0 0.0
    %679 = vmatprep.subr.mxu0 0.0
    %680 = vmatpush1.msra.mxu0 0.0
    %681 = vmatprep.subr.mxu0 0.0
    %682 = vmatpush1.msra.mxu0 0.0
    %683 = vmatprep.subr.mxu0 0.0
    %684 = vmatpush1.msra.mxu0 0.0
    %685 = vmatprep.subr.mxu0 0.0
    %686 = vmatpush1.msra.mxu0 0.0
    %687 = vmatprep.subr.mxu0 0.0
    %688 = vmatpush1.msra.mxu0 0.0
    %689 = vmatprep.subr.mxu0 0.0
    %690 = vmatpush1.msra.mxu0 0.0
    %691 = vmatprep.subr.mxu0 0.0
    %692 = vmatpush1.msra.mxu0 0.0
    %693 = vmatprep.mubr.f32.mxu0 0.0
    %694 = vmatmul.mubr.f32.gmra.mrb[0].mxu0 %v470
    %v695 = vpop.f32.mrb[0].mxu0
    %v696 = vadd.f32 0.0, %v695
    %v697 = vpop.f32.mrb[0].mxu0
    %v698 = vadd.f32 0.0, %v697
    %699 = vmatprep.mubr.f32.mxu0 0.0
    %700 = vmatmul.mubr.f32.gmra.mrb[0].mxu0 %v473
    %v701 = vpop.f32.mrb[0].mxu0
    %v702 = vadd.f32 0.0, %v701
    %v703 = vpop.f32.mrb[0].mxu0
    %v704 = vadd.f32 0.0, %v703
    %705 = vdwg.mxu0
    %706 = vmatprep.subr.mxu0 %v248
    %707 = vmatpush1.msra.mxu0 %v247
    %708 = vmatprep.subr.mxu0 %v252
    %709 = vmatpush1.msra.mxu0 %v251
    %710 = vmatprep.subr.mxu0 %v256
    %711 = vmatpush1.msra.mxu0 %v255
    %712 = vmatprep.subr.mxu0 %v260
    %713 = vmatpush1.msra.mxu0 %v259
    %714 = vmatprep.subr.mxu0 %v264
    %715 = vmatpush1.msra.mxu0 %v263
    %716 = vmatprep.subr.mxu0 %v268
    %717 = vmatpush1.msra.mxu0 %v267
    %718 = vmatprep.subr.mxu0 %v272
    %719 = vmatpush1.msra.mxu0 %v271
    %720 = vmatprep.subr.mxu0 %v276
    %721 = vmatpush1.msra.mxu0 %v275
    %722 = vmatprep.subr.mxu0 0.0
    %723 = vmatpush1.msra.mxu0 0.0
    %724 = vmatprep.subr.mxu0 0.0
    %725 = vmatpush1.msra.mxu0 0.0
    %726 = vmatprep.subr.mxu0 0.0
    %727 = vmatpush1.msra.mxu0 0.0
    %728 = vmatprep.subr.mxu0 0.0
    %729 = vmatpush1.msra.mxu0 0.0
    %730 = vmatprep.subr.mxu0 0.0
    %731 = vmatpush1.msra.mxu0 0.0
    %732 = vmatprep.subr.mxu0 0.0
    %733 = vmatpush1.msra.mxu0 0.0
    %734 = vmatprep.subr.mxu0 0.0
    %735 = vmatpush1.msra.mxu0 0.0
    %736 = vmatprep.subr.mxu0 0.0
    %737 = vmatpush1.msra.mxu0 0.0
    %738 = vmatprep.subr.mxu0 0.0
    %739 = vmatpush1.msra.mxu0 0.0
    %740 = vmatprep.subr.mxu0 0.0
    %741 = vmatpush1.msra.mxu0 0.0
    %742 = vmatprep.subr.mxu0 0.0
    %743 = vmatpush1.msra.mxu0 0.0
    %744 = vmatprep.subr.mxu0 0.0
    %745 = vmatpush1.msra.mxu0 0.0
    %746 = vmatprep.subr.mxu0 0.0
    %747 = vmatpush1.msra.mxu0 0.0
    %748 = vmatprep.subr.mxu0 0.0
    %749 = vmatpush1.msra.mxu0 0.0
    %750 = vmatprep.subr.mxu0 0.0
    %751 = vmatpush1.msra.mxu0 0.0
    %752 = vmatprep.subr.mxu0 0.0
    %753 = vmatpush1.msra.mxu0 0.0
    %754 = vmatprep.subr.mxu0 0.0
    %755 = vmatpush1.msra.mxu0 0.0
    %756 = vmatprep.subr.mxu0 0.0
    %757 = vmatpush1.msra.mxu0 0.0
    %758 = vmatprep.subr.mxu0 0.0
    %759 = vmatpush1.msra.mxu0 0.0
    %760 = vmatprep.subr.mxu0 0.0
    %761 = vmatpush1.msra.mxu0 0.0
    %762 = vmatprep.subr.mxu0 0.0
    %763 = vmatpush1.msra.mxu0 0.0
    %764 = vmatprep.subr.mxu0 0.0
    %765 = vmatpush1.msra.mxu0 0.0
    %766 = vmatprep.subr.mxu0 0.0
    %767 = vmatpush1.msra.mxu0 0.0
    %768 = vmatprep.subr.mxu0 0.0
    %769 = vmatpush1.msra.mxu0 0.0
    %770 = vmatprep.mubr.f32.mxu0 0.0
    %771 = vmatmul.mubr.f32.gmra.mrb[0].mxu0 %v470
    %v772 = vpop.f32.mrb[0].mxu0
    %v773 = vadd.f32 0.0, %v772
    %v774 = vpop.f32.mrb[0].mxu0
    %v775 = vadd.f32 0.0, %v774
    %776 = vmatprep.mubr.f32.mxu0 0.0
    %777 = vmatmul.mubr.f32.gmra.mrb[0].mxu0 %v473
    %v778 = vpop.f32.mrb[0].mxu0
    %v779 = vadd.f32 0.0, %v778
    %v780 = vpop.f32.mrb[0].mxu0
    %v781 = vadd.f32 0.0, %v780
    %782 = vdwg.mxu0
    %v783 = vmul.f32 %v696, %v542
    %v784 = vmul.f32 %v698, %v544
    %v785 = vmul.f32 %v773, %v619
    %v786 = vmul.f32 %v775, %v621
    %v787 = vmul.f32 %v702, %v548
    %v788 = vmul.f32 %v704, %v550
    %v789 = vmul.f32 %v779, %v625
    %v790 = vmul.f32 %v781, %v627
    %v791 = vadd.f32 %v783, %v784
    %v792 = vadd.f32 %v787, %v788
    %v793 = vadd.f32 %v791, %v785
    %v794 = vadd.f32 %v792, %v789
    %v795 = vadd.f32 %v793, %v786
    %v796 = vadd.f32 %v794, %v790
    %v797 = vlaneseq
    %v798 = vshrl.u32 %v797, 7
    %v799 = vsub.s32 0, %v798
    %v800 = vrot.slane %v208, %v799
    %v801 = vadd.f32 %v795, %v800
    %v802 = vadd.f32 %v796, %v800
    %v803 = vmax.f32 %v801, 0.0
    %v804 = vmax.f32 %v802, 0.0
    %807 = vrot.lane.b32.xlu0 %v803, 64
    %v808 = vpop.permute.xlu0 %807
    %809 = vrot.lane.b32.xlu0 %v804, 64
    %v810 = vpop.permute.xlu0 %809
    %v811 = vsel %vm468, %v808, 0
    %v813 = vsel %vm468, %v810, 0
    %815 = vmatprep.subr.mxu0 %v278
    %816 = vmatpush1.msra.mxu0 %v277
    %817 = vmatprep.subr.mxu0 %v280
    %818 = vmatpush1.msra.mxu0 %v279
    %819 = vmatprep.subr.mxu0 %v282
    %820 = vmatpush1.msra.mxu0 %v281
    %821 = vmatprep.subr.mxu0 %v284
    %822 = vmatpush1.msra.mxu0 %v283
    %823 = vmatprep.subr.mxu0 %v286
    %824 = vmatpush1.msra.mxu0 %v285
    %825 = vmatprep.subr.mxu0 %v288
    %826 = vmatpush1.msra.mxu0 %v287
    %827 = vmatprep.subr.mxu0 %v290
    %828 = vmatpush1.msra.mxu0 %v289
    %829 = vmatprep.subr.mxu0 %v292
    %830 = vmatpush1.msra.mxu0 %v291
    %831 = vmatprep.subr.mxu0 0.0
    %832 = vmatpush1.msra.mxu0 0.0
    %833 = vmatprep.subr.mxu0 0.0
    %834 = vmatpush1.msra.mxu0 0.0
    %835 = vmatprep.subr.mxu0 0.0
    %836 = vmatpush1.msra.mxu0 0.0
    %837 = vmatprep.subr.mxu0 0.0
    %838 = vmatpush1.msra.mxu0 0.0
    %839 = vmatprep.subr.mxu0 0.0
    %840 = vmatpush1.msra.mxu0 0.0
    %841 = vmatprep.subr.mxu0 0.0
    %842 = vmatpush1.msra.mxu0 0.0
    %843 = vmatprep.subr.mxu0 0.0
    %844 = vmatpush1.msra.mxu0 0.0
    %845 = vmatprep.subr.mxu0 0.0
    %846 = vmatpush1.msra.mxu0 0.0
    %847 = vmatprep.subr.mxu0 0.0
    %848 = vmatpush1.msra.mxu0 0.0
    %849 = vmatprep.subr.mxu0 0.0
    %850 = vmatpush1.msra.mxu0 0.0
    %851 = vmatprep.subr.mxu0 0.0
    %852 = vmatpush1.msra.mxu0 0.0
    %853 = vmatprep.subr.mxu0 0.0
    %854 = vmatpush1.msra.mxu0 0.0
    %855 = vmatprep.subr.mxu0 0.0
    %856 = vmatpush1.msra.mxu0 0.0
    %857 = vmatprep.subr.mxu0 0.0
    %858 = vmatpush1.msra.mxu0 0.0
    %859 = vmatprep.subr.mxu0 0.0
    %860 = vmatpush1.msra.mxu0 0.0
    %861 = vmatprep.subr.mxu0 0.0
    %862 = vmatpush1.msra.mxu0 0.0
    %863 = vmatprep.subr.mxu0 0.0
    %864 = vmatpush1.msra.mxu0 0.0
    %865 = vmatprep.subr.mxu0 0.0
    %866 = vmatpush1.msra.mxu0 0.0
    %867 = vmatprep.subr.mxu0 0.0
    %868 = vmatpush1.msra.mxu0 0.0
    %869 = vmatprep.subr.mxu0 0.0
    %870 = vmatpush1.msra.mxu0 0.0
    %871 = vmatprep.subr.mxu0 0.0
    %872 = vmatpush1.msra.mxu0 0.0
    %873 = vmatprep.subr.mxu0 0.0
    %874 = vmatpush1.msra.mxu0 0.0
    %875 = vmatprep.subr.mxu0 0.0
    %876 = vmatpush1.msra.mxu0 0.0
    %877 = vmatprep.subr.mxu0 0.0
    %878 = vmatpush1.msra.mxu0 0.0
    %879 = vmatprep.mubr.f32.mxu0 0.0
    %880 = vmatmul.mubr.f32.gmra.mrb[0].mxu0 %v811
    %v881 = vpop.f32.mrb[0].mxu0
    %v882 = vadd.f32 0.0, %v881
    %v883 = vpop.f32.mrb[0].mxu0
    %v884 = vadd.f32 0.0, %v883
    %885 = vmatprep.mubr.f32.mxu0 0.0
    %886 = vmatmul.mubr.f32.gmra.mrb[0].mxu0 %v813
    %v887 = vpop.f32.mrb[0].mxu0
    %v888 = vadd.f32 0.0, %v887
    %v889 = vpop.f32.mrb[0].mxu0
    %v890 = vadd.f32 0.0, %v889
    %891 = vdwg.mxu0
    %892 = vmatprep.subr.mxu0 %v294
    %893 = vmatpush1.msra.mxu0 %v293
    %894 = vmatprep.subr.mxu0 %v296
    %895 = vmatpush1.msra.mxu0 %v295
    %896 = vmatprep.subr.mxu0 %v298
    %897 = vmatpush1.msra.mxu0 %v297
    %898 = vmatprep.subr.mxu0 %v300
    %899 = vmatpush1.msra.mxu0 %v299
    %900 = vmatprep.subr.mxu0 %v302
    %901 = vmatpush1.msra.mxu0 %v301
    %902 = vmatprep.subr.mxu0 %v304
    %903 = vmatpush1.msra.mxu0 %v303
    %904 = vmatprep.subr.mxu0 %v306
    %905 = vmatpush1.msra.mxu0 %v305
    %906 = vmatprep.subr.mxu0 %v308
    %907 = vmatpush1.msra.mxu0 %v307
    %908 = vmatprep.subr.mxu0 0.0
    %909 = vmatpush1.msra.mxu0 0.0
    %910 = vmatprep.subr.mxu0 0.0
    %911 = vmatpush1.msra.mxu0 0.0
    %912 = vmatprep.subr.mxu0 0.0
    %913 = vmatpush1.msra.mxu0 0.0
    %914 = vmatprep.subr.mxu0 0.0
    %915 = vmatpush1.msra.mxu0 0.0
    %916 = vmatprep.subr.mxu0 0.0
    %917 = vmatpush1.msra.mxu0 0.0
    %918 = vmatprep.subr.mxu0 0.0
    %919 = vmatpush1.msra.mxu0 0.0
    %920 = vmatprep.subr.mxu0 0.0
    %921 = vmatpush1.msra.mxu0 0.0
    %922 = vmatprep.subr.mxu0 0.0
    %923 = vmatpush1.msra.mxu0 0.0
    %924 = vmatprep.subr.mxu0 0.0
    %925 = vmatpush1.msra.mxu0 0.0
    %926 = vmatprep.subr.mxu0 0.0
    %927 = vmatpush1.msra.mxu0 0.0
    %928 = vmatprep.subr.mxu0 0.0
    %929 = vmatpush1.msra.mxu0 0.0
    %930 = vmatprep.subr.mxu0 0.0
    %931 = vmatpush1.msra.mxu0 0.0
    %932 = vmatprep.subr.mxu0 0.0
    %933 = vmatpush1.msra.mxu0 0.0
    %934 = vmatprep.subr.mxu0 0.0
    %935 = vmatpush1.msra.mxu0 0.0
    %936 = vmatprep.subr.mxu0 0.0
    %937 = vmatpush1.msra.mxu0 0.0
    %938 = vmatprep.subr.mxu0 0.0
    %939 = vmatpush1.msra.mxu0 0.0
    %940 = vmatprep.subr.mxu0 0.0
    %941 = vmatpush1.msra.mxu0 0.0
    %942 = vmatprep.subr.mxu0 0.0
    %943 = vmatpush1.msra.mxu0 0.0
    %944 = vmatprep.subr.mxu0 0.0
    %945 = vmatpush1.msra.mxu0 0.0
    %946 = vmatprep.subr.mxu0 0.0
    %947 = vmatpush1.msra.mxu0 0.0
    %948 = vmatprep.subr.mxu0 0.0
    %949 = vmatpush1.msra.mxu0 0.0
    %950 = vmatprep.subr.mxu0 0.0
    %951 = vmatpush1.msra.mxu0 0.0
    %952 = vmatprep.subr.mxu0 0.0
    %953 = vmatpush1.msra.mxu0 0.0
    %954 = vmatprep.subr.mxu0 0.0
    %955 = vmatpush1.msra.mxu0 0.0
    %956 = vmatprep.mubr.f32.mxu0 0.0
    %957 = vmatmul.mubr.f32.gmra.mrb[0].mxu0 %v470
    %v958 = vpop.f32.mrb[0].mxu0
    %v959 = vadd.f32 0.0, %v958
    %v960 = vpop.f32.mrb[0].mxu0
    %v961 = vadd.f32 0.0, %v960
    %962 = vmatprep.mubr.f32.mxu0 0.0
    %963 = vmatmul.mubr.f32.gmra.mrb[0].mxu0 %v473
    %v964 = vpop.f32.mrb[0].mxu0
    %v965 = vadd.f32 0.0, %v964
    %v966 = vpop.f32.mrb[0].mxu0
    %v967 = vadd.f32 0.0, %v966
    %968 = vdwg.mxu0
    %v969 = vmul.f32 %v959, %v882
    %v970 = vmul.f32 %v961, %v884
    %v971 = vmul.f32 %v965, %v888
    %v972 = vmul.f32 %v967, %v890
    %975 = vrot.lane.b32.xlu0 %v969, 64
    %v976 = vpop.permute.xlu0 %975
    %977 = vrot.lane.b32.xlu0 %v971, 64
    %v978 = vpop.permute.xlu0 %977
    %v981 = vadd.f32 %v969, %v976
    %v982 = vadd.f32 %v971, %v978
    %v983 = vadd.f32 %v981, %v970
    %v984 = vadd.f32 %v982, %v972
    %987 = vrot.lane.b32.xlu0 %v970, 64
    %v988 = vpop.permute.xlu0 %987
    %989 = vrot.lane.b32.xlu0 %v972, 64
    %v990 = vpop.permute.xlu0 %989
    %v993 = vadd.f32 %v983, %v988
    %v994 = vadd.f32 %v984, %v990
    %v995 = vlaneseq
    %v996 = vshrl.u32 %v995, 7
    %v997 = vsub.s32 0, %v996
    %v998 = vrot.slane %v209, %v997
    %v999 = vadd.f32 %v993, %v998
    %v1000 = vadd.f32 %v994, %v998
    %v1001 = vmax.f32 %v999, 0.0
    %v1002 = vmax.f32 %v1000, 0.0
    %v1003 = vlaneseq
    %v1004 = vshrl.u32 %v1003, 7
    %v1005 = vsub.s32 0, %v1004
    %v1006 = vrot.slane %v206, %v1005
    %1007 = vmatprep.subr.mxu0 0.0
    %1008 = vmatpush1.msra.mxu0 %v194
    %1009 = vmatprep.subr.mxu0 0.0
    %1010 = vmatpush1.msra.mxu0 %v195
    %1011 = vmatprep.subr.mxu0 0.0
    %1012 = vmatpush1.msra.mxu0 %v196
    %1013 = vmatprep.subr.mxu0 0.0
    %1014 = vmatpush1.msra.mxu0 %v197
    %1015 = vmatprep.subr.mxu0 0.0
    %1016 = vmatpush1.msra.mxu0 %v198
    %1017 = vmatprep.subr.mxu0 0.0
    %1018 = vmatpush1.msra.mxu0 %v199
    %1019 = vmatprep.subr.mxu0 0.0
    %1020 = vmatpush1.msra.mxu0 %v200
    %1021 = vmatprep.subr.mxu0 0.0
    %1022 = vmatpush1.msra.mxu0 %v201
    %1023 = vmatprep.subr.mxu0 0.0
    %1024 = vmatpush1.msra.mxu0 0.0
    %1025 = vmatprep.subr.mxu0 0.0
    %1026 = vmatpush1.msra.mxu0 0.0
    %1027 = vmatprep.subr.mxu0 0.0
    %1028 = vmatpush1.msra.mxu0 0.0
    %1029 = vmatprep.subr.mxu0 0.0
    %1030 = vmatpush1.msra.mxu0 0.0
    %1031 = vmatprep.subr.mxu0 0.0
    %1032 = vmatpush1.msra.mxu0 0.0
    %1033 = vmatprep.subr.mxu0 0.0
    %1034 = vmatpush1.msra.mxu0 0.0
    %1035 = vmatprep.subr.mxu0 0.0
    %1036 = vmatpush1.msra.mxu0 0.0
    %1037 = vmatprep.subr.mxu0 0.0
    %1038 = vmatpush1.msra.mxu0 0.0
    %1039 = vmatprep.subr.mxu0 0.0
    %1040 = vmatpush1.msra.mxu0 0.0
    %1041 = vmatprep.subr.mxu0 0.0
    %1042 = vmatpush1.msra.mxu0 0.0
    %1043 = vmatprep.subr.mxu0 0.0
    %1044 = vmatpush1.msra.mxu0 0.0
    %1045 = vmatprep.subr.mxu0 0.0
    %1046 = vmatpush1.msra.mxu0 0.0
    %1047 = vmatprep.subr.mxu0 0.0
    %1048 = vmatpush1.msra.mxu0 0.0
    %1049 = vmatprep.subr.mxu0 0.0
    %1050 = vmatpush1.msra.mxu0 0.0
    %1051 = vmatprep.subr.mxu0 0.0
    %1052 = vmatpush1.msra.mxu0 0.0
    %1053 = vmatprep.subr.mxu0 0.0
    %1054 = vmatpush1.msra.mxu0 0.0
    %1055 = vmatprep.subr.mxu0 0.0
    %1056 = vmatpush1.msra.mxu0 0.0
    %1057 = vmatprep.subr.mxu0 0.0
    %1058 = vmatpush1.msra.mxu0 0.0
    %1059 = vmatprep.subr.mxu0 0.0
    %1060 = vmatpush1.msra.mxu0 0.0
    %1061 = vmatprep.subr.mxu0 0.0
    %1062 = vmatpush1.msra.mxu0 0.0
    %1063 = vmatprep.subr.mxu0 0.0
    %1064 = vmatpush1.msra.mxu0 0.0
    %1065 = vmatprep.subr.mxu0 0.0
    %1066 = vmatpush1.msra.mxu0 0.0
    %1067 = vmatprep.subr.mxu0 0.0
    %1068 = vmatpush1.msra.mxu0 0.0
    %1069 = vmatprep.subr.mxu0 0.0
    %1070 = vmatpush1.msra.mxu0 0.0
    %1071 = vmatprep.mubr.f32.mxu0 0.0
    %1072 = vmatmul.mubr.f32.gmra.mrb[0].mxu0 %v470
    %v1073 = vpop.f32.mrb[0].mxu0
    %v1074 = vadd.f32 %v1006, %v1073
    %v1075 = vpop.f32.mrb[0].mxu0
    %1076 = vmatprep.mubr.f32.mxu0 0.0
    %1077 = vmatmul.mubr.f32.gmra.mrb[0].mxu0 %v473
    %v1078 = vpop.f32.mrb[0].mxu0
    %v1079 = vadd.f32 %v1006, %v1078
    %v1080 = vpop.f32.mrb[0].mxu0
    %1081 = vdwg.mxu0
    %v1082 = vmax.f32 %v1074, 0.0
    %v1083 = vmax.f32 %v1079, 0.0
    %v1084 = vlaneseq
    %v1085 = vshrl.u32 %v1084, 7
    %v1086 = vsub.s32 0, %v1085
    %v1087 = vrot.slane %v207, %v1086
    %vm1088 = vcmask 261120
    %v1090 = vsel %vm1088, %v1082, 0
    %v1093 = vsel %vm1088, %v1083, 0
    %1095 = vmatprep.subr.mxu0 0.0
    %1096 = vmatpush1.msra.mxu0 %v202
    %1097 = vmatprep.subr.mxu0 0.0
    %1098 = vmatpush1.msra.mxu0 %v203
    %1099 = vmatprep.subr.mxu0 0.0
    %1100 = vmatpush1.msra.mxu0 %v204
    %1101 = vmatprep.subr.mxu0 0.0
    %1102 = vmatpush1.msra.mxu0 %v205
    %1103 = vmatprep.subr.mxu0 0.0
    %1104 = vmatpush1.msra.mxu0 0.0
    %1105 = vmatprep.subr.mxu0 0.0
    %1106 = vmatpush1.msra.mxu0 0.0
    %1107 = vmatprep.subr.mxu0 0.0
    %1108 = vmatpush1.msra.mxu0 0.0
    %1109 = vmatprep.subr.mxu0 0.0
    %1110 = vmatpush1.msra.mxu0 0.0
    %1111 = vmatprep.subr.mxu0 0.0
    %1112 = vmatpush1.msra.mxu0 0.0
    %1113 = vmatprep.subr.mxu0 0.0
    %1114 = vmatpush1.msra.mxu0 0.0
    %1115 = vmatprep.subr.mxu0 0.0
    %1116 = vmatpush1.msra.mxu0 0.0
    %1117 = vmatprep.subr.mxu0 0.0
    %1118 = vmatpush1.msra.mxu0 0.0
    %1119 = vmatprep.subr.mxu0 0.0
    %1120 = vmatpush1.msra.mxu0 0.0
    %1121 = vmatprep.subr.mxu0 0.0
    %1122 = vmatpush1.msra.mxu0 0.0
    %1123 = vmatprep.subr.mxu0 0.0
    %1124 = vmatpush1.msra.mxu0 0.0
    %1125 = vmatprep.subr.mxu0 0.0
    %1126 = vmatpush1.msra.mxu0 0.0
    %1127 = vmatprep.subr.mxu0 0.0
    %1128 = vmatpush1.msra.mxu0 0.0
    %1129 = vmatprep.subr.mxu0 0.0
    %1130 = vmatpush1.msra.mxu0 0.0
    %1131 = vmatprep.subr.mxu0 0.0
    %1132 = vmatpush1.msra.mxu0 0.0
    %1133 = vmatprep.subr.mxu0 0.0
    %1134 = vmatpush1.msra.mxu0 0.0
    %1135 = vmatprep.subr.mxu0 0.0
    %1136 = vmatpush1.msra.mxu0 0.0
    %1137 = vmatprep.subr.mxu0 0.0
    %1138 = vmatpush1.msra.mxu0 0.0
    %1139 = vmatprep.subr.mxu0 0.0
    %1140 = vmatpush1.msra.mxu0 0.0
    %1141 = vmatprep.subr.mxu0 0.0
    %1142 = vmatpush1.msra.mxu0 0.0
    %1143 = vmatprep.subr.mxu0 0.0
    %1144 = vmatpush1.msra.mxu0 0.0
    %1145 = vmatprep.subr.mxu0 0.0
    %1146 = vmatpush1.msra.mxu0 0.0
    %1147 = vmatprep.subr.mxu0 0.0
    %1148 = vmatpush1.msra.mxu0 0.0
    %1149 = vmatprep.subr.mxu0 0.0
    %1150 = vmatpush1.msra.mxu0 0.0
    %1151 = vmatprep.subr.mxu0 0.0
    %1152 = vmatpush1.msra.mxu0 0.0
    %1153 = vmatprep.subr.mxu0 0.0
    %1154 = vmatpush1.msra.mxu0 0.0
    %1155 = vmatprep.subr.mxu0 0.0
    %1156 = vmatpush1.msra.mxu0 0.0
    %1157 = vmatprep.subr.mxu0 0.0
    %1158 = vmatpush1.msra.mxu0 0.0
    %1159 = vmatprep.mubr.f32.mxu0 0.0
    %1160 = vmatmul.mubr.f32.gmra.mrb[0].mxu0 %v1090
    %v1161 = vpop.f32.mrb[0].mxu0
    %v1162 = vadd.f32 %v1087, %v1161
    %v1163 = vpop.f32.mrb[0].mxu0
    %1164 = vmatprep.mubr.f32.mxu0 0.0
    %1165 = vmatmul.mubr.f32.gmra.mrb[0].mxu0 %v1093
    %v1166 = vpop.f32.mrb[0].mxu0
    %v1167 = vadd.f32 %v1087, %v1166
    %v1168 = vpop.f32.mrb[0].mxu0
    %1169 = vdwg.mxu0
    %v1170 = vmax.f32 %v1162, 0.0
    %v1171 = vmax.f32 %v1167, 0.0
    %v1173 = vsel %vm468, %v210, 0
    %v1175 = vsel %vm468, %v803, 0
    %v1177 = vsel %vm468, %v804, 0
    %1179 = vmatprep.subr.mxu0 0.0
    %1180 = vmatpush1.xpose.msra.mxu0 %v1175
    %1181 = vmatprep.subr.mxu0 0.0
    %1182 = vmatpush1.xpose.msra.mxu0 %v1177
    %1183 = vmatprep.subr.mxu0 0.0
    %1184 = vmatpush1.xpose.msra.mxu0 0.0
    %1185 = vmatprep.subr.mxu0 0.0
    %1186 = vmatpush1.xpose.msra.mxu0 0.0
    %1187 = vmatprep.subr.mxu0 0.0
    %1188 = vmatpush1.xpose.msra.mxu0 0.0
    %1189 = vmatprep.subr.mxu0 0.0
    %1190 = vmatpush1.xpose.msra.mxu0 0.0
    %1191 = vmatprep.subr.mxu0 0.0
    %1192 = vmatpush1.xpose.msra.mxu0 0.0
    %1193 = vmatprep.subr.mxu0 0.0
    %1194 = vmatpush1.xpose.msra.mxu0 0.0
    %1195 = vmatprep.subr.mxu0 0.0
    %1196 = vmatpush1.xpose.msra.mxu0 0.0
    %1197 = vmatprep.subr.mxu0 0.0
    %1198 = vmatpush1.xpose.msra.mxu0 0.0
    %1199 = vmatprep.subr.mxu0 0.0
    %1200 = vmatpush1.xpose.msra.mxu0 0.0
    %1201 = vmatprep.subr.mxu0 0.0
    %1202 = vmatpush1.xpose.msra.mxu0 0.0
    %1203 = vmatprep.subr.mxu0 0.0
    %1204 = vmatpush1.xpose.msra.mxu0 0.0
    %1205 = vmatprep.subr.mxu0 0.0
    %1206 = vmatpush1.xpose.msra.mxu0 0.0
    %1207 = vmatprep.subr.mxu0 0.0
    %1208 = vmatpush1.xpose.msra.mxu0 0.0
    %1209 = vmatprep.subr.mxu0 0.0
    %1210 = vmatpush1.xpose.msra.mxu0 0.0
    %1211 = vmatprep.subr.mxu0 0.0
    %1212 = vmatpush1.xpose.msra.mxu0 0.0
    %1213 = vmatprep.subr.mxu0 0.0
    %1214 = vmatpush1.xpose.msra.mxu0 0.0
    %1215 = vmatprep.subr.mxu0 0.0
    %1216 = vmatpush1.xpose.msra.mxu0 0.0
    %1217 = vmatprep.subr.mxu0 0.0
    %1218 = vmatpush1.xpose.msra.mxu0 0.0
    %1219 = vmatprep.subr.mxu0 0.0
    %1220 = vmatpush1.xpose.msra.mxu0 0.0
    %1221 = vmatprep.subr.mxu0 0.0
    %1222 = vmatpush1.xpose.msra.mxu0 0.0
    %1223 = vmatprep.subr.mxu0 0.0
    %1224 = vmatpush1.xpose.msra.mxu0 0.0
    %1225 = vmatprep.subr.mxu0 0.0
    %1226 = vmatpush1.xpose.msra.mxu0 0.0
    %1227 = vmatprep.subr.mxu0 0.0
    %1228 = vmatpush1.xpose.msra.mxu0 0.0
    %1229 = vmatprep.subr.mxu0 0.0
    %1230 = vmatpush1.xpose.msra.mxu0 0.0
    %1231 = vmatprep.subr.mxu0 0.0
    %1232 = vmatpush1.xpose.msra.mxu0 0.0
    %1233 = vmatprep.subr.mxu0 0.0
    %1234 = vmatpush1.xpose.msra.mxu0 0.0
    %1235 = vmatprep.subr.mxu0 0.0
    %1236 = vmatpush1.xpose.msra.mxu0 0.0
    %1237 = vmatprep.subr.mxu0 0.0
    %1238 = vmatpush1.xpose.msra.mxu0 0.0
    %1239 = vmatprep.subr.mxu0 0.0
    %1240 = vmatpush1.xpose.msra.mxu0 0.0
    %1241 = vmatprep.subr.mxu0 0.0
    %1242 = vmatpush1.xpose.msra.mxu0 0.0
    %1243 = vmatprep.mubr.f32.mxu0 0.0
    %1244 = vmatmul.mubr.f32.gmra.mrb[0].mxu0 %v1173
    %v1245 = vpop.f32.mrb[0].mxu0
    %v1246 = vadd.f32 0.0, %v1245
    %v1247 = vpop.f32.mrb[0].mxu0
    %1248 = vdwg.mxu0
    %v1250 = vsel %vm468, %v211, 0
    %v1253 = vsel %vm468, %v1001, 0
    %v1256 = vsel %vm468, %v1002, 0
    %1258 = vmatprep.subr.mxu0 0.0
    %1259 = vmatpush1.xpose.msra.mxu0 %v1253
    %1260 = vmatprep.subr.mxu0 0.0
    %1261 = vmatpush1.xpose.msra.mxu0 %v1256
    %1262 = vmatprep.subr.mxu0 0.0
    %1263 = vmatpush1.xpose.msra.mxu0 0.0
    %1264 = vmatprep.subr.mxu0 0.0
    %1265 = vmatpush1.xpose.msra.mxu0 0.0
    %1266 = vmatprep.subr.mxu0 0.0
    %1267 = vmatpush1.xpose.msra.mxu0 0.0
    %1268 = vmatprep.subr.mxu0 0.0
    %1269 = vmatpush1.xpose.msra.mxu0 0.0
    %1270 = vmatprep.subr.mxu0 0.0
    %1271 = vmatpush1.xpose.msra.mxu0 0.0
    %1272 = vmatprep.subr.mxu0 0.0
    %1273 = vmatpush1.xpose.msra.mxu0 0.0
    %1274 = vmatprep.subr.mxu0 0.0
    %1275 = vmatpush1.xpose.msra.mxu0 0.0
    %1276 = vmatprep.subr.mxu0 0.0
    %1277 = vmatpush1.xpose.msra.mxu0 0.0
    %1278 = vmatprep.subr.mxu0 0.0
    %1279 = vmatpush1.xpose.msra.mxu0 0.0
    %1280 = vmatprep.subr.mxu0 0.0
    %1281 = vmatpush1.xpose.msra.mxu0 0.0
    %1282 = vmatprep.subr.mxu0 0.0
    %1283 = vmatpush1.xpose.msra.mxu0 0.0
    %1284 = vmatprep.subr.mxu0 0.0
    %1285 = vmatpush1.xpose.msra.mxu0 0.0
    %1286 = vmatprep.subr.mxu0 0.0
    %1287 = vmatpush1.xpose.msra.mxu0 0.0
    %1288 = vmatprep.subr.mxu0 0.0
    %1289 = vmatpush1.xpose.msra.mxu0 0.0
    %1290 = vmatprep.subr.mxu0 0.0
    %1291 = vmatpush1.xpose.msra.mxu0 0.0
    %1292 = vmatprep.subr.mxu0 0.0
    %1293 = vmatpush1.xpose.msra.mxu0 0.0
    %1294 = vmatprep.subr.mxu0 0.0
    %1295 = vmatpush1.xpose.msra.mxu0 0.0
    %1296 = vmatprep.subr.mxu0 0.0
    %1297 = vmatpush1.xpose.msra.mxu0 0.0
    %1298 = vmatprep.subr.mxu0 0.0
    %1299 = vmatpush1.xpose.msra.mxu0 0.0
    %1300 = vmatprep.subr.mxu0 0.0
    %1301 = vmatpush1.xpose.msra.mxu0 0.0
    %1302 = vmatprep.subr.mxu0 0.0
    %1303 = vmatpush1.xpose.msra.mxu0 0.0
    %1304 = vmatprep.subr.mxu0 0.0
    %1305 = vmatpush1.xpose.msra.mxu0 0.0
    %1306 = vmatprep.subr.mxu0 0.0
    %1307 = vmatpush1.xpose.msra.mxu0 0.0
    %1308 = vmatprep.subr.mxu0 0.0
    %1309 = vmatpush1.xpose.msra.mxu0 0.0
    %1310 = vmatprep.subr.mxu0 0.0
    %1311 = vmatpush1.xpose.msra.mxu0 0.0
    %1312 = vmatprep.subr.mxu0 0.0
    %1313 = vmatpush1.xpose.msra.mxu0 0.0
    %1314 = vmatprep.subr.mxu0 0.0
    %1315 = vmatpush1.xpose.msra.mxu0 0.0
    %1316 = vmatprep.subr.mxu0 0.0
    %1317 = vmatpush1.xpose.msra.mxu0 0.0
    %1318 = vmatprep.subr.mxu0 0.0
    %1319 = vmatpush1.xpose.msra.mxu0 0.0
    %1320 = vmatprep.subr.mxu0 0.0
    %1321 = vmatpush1.xpose.msra.mxu0 0.0
    %1322 = vmatprep.mubr.f32.mxu0 0.0
    %1323 = vmatmul.mubr.f32.gmra.mrb[0].mxu0 %v1250
    %v1324 = vpop.f32.mrb[0].mxu0
    %v1325 = vadd.f32 0.0, %v1324
    %v1326 = vpop.f32.mrb[0].mxu0
    %1327 = vdwg.mxu0
    %v1329 = vsel %vm311, %v212, 0
    %v1332 = vsel %vm311, %v1170, 0
    %v1335 = vsel %vm311, %v1171, 0
    %1337 = vmatprep.subr.mxu0 0.0
    %1338 = vmatpush1.xpose.msra.mxu0 %v1332
    %1339 = vmatprep.subr.mxu0 0.0
    %1340 = vmatpush1.xpose.msra.mxu0 %v1335
    %1341 = vmatprep.subr.mxu0 0.0
    %1342 = vmatpush1.xpose.msra.mxu0 0.0
    %1343 = vmatprep.subr.mxu0 0.0
    %1344 = vmatpush1.xpose.msra.mxu0 0.0
    %1345 = vmatprep.subr.mxu0 0.0
    %1346 = vmatpush1.xpose.msra.mxu0 0.0
    %1347 = vmatprep.subr.mxu0 0.0
    %1348 = vmatpush1.xpose.msra.mxu0 0.0
    %1349 = vmatprep.subr.mxu0 0.0
    %1350 = vmatpush1.xpose.msra.mxu0 0.0
    %1351 = vmatprep.subr.mxu0 0.0
    %1352 = vmatpush1.xpose.msra.mxu0 0.0
    %1353 = vmatprep.subr.mxu0 0.0
    %1354 = vmatpush1.xpose.msra.mxu0 0.0
    %1355 = vmatprep.subr.mxu0 0.0
    %1356 = vmatpush1.xpose.msra.mxu0 0.0
    %1357 = vmatprep.subr.mxu0 0.0
    %1358 = vmatpush1.xpose.msra.mxu0 0.0
    %1359 = vmatprep.subr.mxu0 0.0
    %1360 = vmatpush1.xpose.msra.mxu0 0.0
    %1361 = vmatprep.subr.mxu0 0.0
    %1362 = vmatpush1.xpose.msra.mxu0 0.0
    %1363 = vmatprep.subr.mxu0 0.0
    %1364 = vmatpush1.xpose.msra.mxu0 0.0
    %1365 = vmatprep.subr.mxu0 0.0
    %1366 = vmatpush1.xpose.msra.mxu0 0.0
    %1367 = vmatprep.subr.mxu0 0.0
    %1368 = vmatpush1.xpose.msra.mxu0 0.0
    %1369 = vmatprep.subr.mxu0 0.0
    %1370 = vmatpush1.xpose.msra.mxu0 0.0
    %1371 = vmatprep.subr.mxu0 0.0
    %1372 = vmatpush1.xpose.msra.mxu0 0.0
    %1373 = vmatprep.subr.mxu0 0.0
    %1374 = vmatpush1.xpose.msra.mxu0 0.0
    %1375 = vmatprep.subr.mxu0 0.0
    %1376 = vmatpush1.xpose.msra.mxu0 0.0
    %1377 = vmatprep.subr.mxu0 0.0
    %1378 = vmatpush1.xpose.msra.mxu0 0.0
    %1379 = vmatprep.subr.mxu0 0.0
    %1380 = vmatpush1.xpose.msra.mxu0 0.0
    %1381 = vmatprep.subr.mxu0 0.0
    %1382 = vmatpush1.xpose.msra.mxu0 0.0
    %1383 = vmatprep.subr.mxu0 0.0
    %1384 = vmatpush1.xpose.msra.mxu0 0.0
    %1385 = vmatprep.subr.mxu0 0.0
    %1386 = vmatpush1.xpose.msra.mxu0 0.0
    %1387 = vmatprep.subr.mxu0 0.0
    %1388 = vmatpush1.xpose.msra.mxu0 0.0
    %1389 = vmatprep.subr.mxu0 0.0
    %1390 = vmatpush1.xpose.msra.mxu0 0.0
    %1391 = vmatprep.subr.mxu0 0.0
    %1392 = vmatpush1.xpose.msra.mxu0 0.0
    %1393 = vmatprep.subr.mxu0 0.0
    %1394 = vmatpush1.xpose.msra.mxu0 0.0
    %1395 = vmatprep.subr.mxu0 0.0
    %1396 = vmatpush1.xpose.msra.mxu0 0.0
    %1397 = vmatprep.subr.mxu0 0.0
    %1398 = vmatpush1.xpose.msra.mxu0 0.0
    %1399 = vmatprep.subr.mxu0 0.0
    %1400 = vmatpush1.xpose.msra.mxu0 0.0
    %1401 = vmatprep.mubr.f32.mxu0 0.0
    %1402 = vmatmul.mubr.f32.gmra.mrb[0].mxu0 %v1329
    %v1403 = vpop.f32.mrb[0].mxu0
    %v1404 = vadd.f32 0.0, %v1403
    %v1405 = vpop.f32.mrb[0].mxu0
    %1406 = vdwg.mxu0
    %v1408 = vlaneseq
    %v1409 = vshrl.u32 %v1408, 7
    %v1410 = vsub.s32 0, %v1409
    %v1411 = vrot.slane %v310, %v1410
    %v1412 = vlaneseq
    %v1413 = vshrl.u32 %v1412, 7
    %v1414 = vsub.s32 1, %v1413
    %v1415 = vrot.slane %v310, %v1414
    %v1416 = vlaneseq
    %v1417 = vshrl.u32 %v1416, 7
    %v1418 = vsub.s32 2, %v1417
    %v1419 = vrot.slane %v310, %v1418
    %v1420 = vlaneseq
    %v1421 = vshrl.u32 %v1420, 7
    %v1422 = vsub.s32 3, %v1421
    %v1423 = vrot.slane %v310, %v1422
    %v1427 = vsel %vm311, %v1423, 0
    %1429 = vmatprep.subr.mxu0 %v137
    %1430 = vmatpush1.xpose.msra.mxu0 %v136
    %1431 = vmatprep.subr.mxu0 %v141
    %1432 = vmatpush1.xpose.msra.mxu0 %v140
    %1433 = vmatprep.subr.mxu0 0.0
    %1434 = vmatpush1.xpose.msra.mxu0 0.0
    %1435 = vmatprep.subr.mxu0 0.0
    %1436 = vmatpush1.xpose.msra.mxu0 0.0
    %1437 = vmatprep.subr.mxu0 0.0
    %1438 = vmatpush1.xpose.msra.mxu0 0.0
    %1439 = vmatprep.subr.mxu0 0.0
    %1440 = vmatpush1.xpose.msra.mxu0 0.0
    %1441 = vmatprep.subr.mxu0 0.0
    %1442 = vmatpush1.xpose.msra.mxu0 0.0
    %1443 = vmatprep.subr.mxu0 0.0
    %1444 = vmatpush1.xpose.msra.mxu0 0.0
    %1445 = vmatprep.subr.mxu0 0.0
    %1446 = vmatpush1.xpose.msra.mxu0 0.0
    %1447 = vmatprep.subr.mxu0 0.0
    %1448 = vmatpush1.xpose.msra.mxu0 0.0
    %1449 = vmatprep.subr.mxu0 0.0
    %1450 = vmatpush1.xpose.msra.mxu0 0.0
    %1451 = vmatprep.subr.mxu0 0.0
    %1452 = vmatpush1.xpose.msra.mxu0 0.0
    %1453 = vmatprep.subr.mxu0 0.0
    %1454 = vmatpush1.xpose.msra.mxu0 0.0
    %1455 = vmatprep.subr.mxu0 0.0
    %1456 = vmatpush1.xpose.msra.mxu0 0.0
    %1457 = vmatprep.subr.mxu0 0.0
    %1458 = vmatpush1.xpose.msra.mxu0 0.0
    %1459 = vmatprep.subr.mxu0 0.0
    %1460 = vmatpush1.xpose.msra.mxu0 0.0
    %1461 = vmatprep.subr.mxu0 0.0
    %1462 = vmatpush1.xpose.msra.mxu0 0.0
    %1463 = vmatprep.subr.mxu0 0.0
    %1464 = vmatpush1.xpose.msra.mxu0 0.0
    %1465 = vmatprep.subr.mxu0 0.0
    %1466 = vmatpush1.xpose.msra.mxu0 0.0
    %1467 = vmatprep.subr.mxu0 0.0
    %1468 = vmatpush1.xpose.msra.mxu0 0.0
    %1469 = vmatprep.subr.mxu0 0.0
    %1470 = vmatpush1.xpose.msra.mxu0 0.0
    %1471 = vmatprep.subr.mxu0 0.0
    %1472 = vmatpush1.xpose.msra.mxu0 0.0
    %1473 = vmatprep.subr.mxu0 0.0
    %1474 = vmatpush1.xpose.msra.mxu0 0.0
    %1475 = vmatprep.subr.mxu0 0.0
    %1476 = vmatpush1.xpose.msra.mxu0 0.0
    %1477 = vmatprep.subr.mxu0 0.0
    %1478 = vmatpush1.xpose.msra.mxu0 0.0
    %1479 = vmatprep.subr.mxu0 0.0
    %1480 = vmatpush1.xpose.msra.mxu0 0.0
    %1481 = vmatprep.subr.mxu0 0.0
    %1482 = vmatpush1.xpose.msra.mxu0 0.0
    %1483 = vmatprep.subr.mxu0 0.0
    %1484 = vmatpush1.xpose.msra.mxu0 0.0
    %1485 = vmatprep.subr.mxu0 0.0
    %1486 = vmatpush1.xpose.msra.mxu0 0.0
    %1487 = vmatprep.subr.mxu0 0.0
    %1488 = vmatpush1.xpose.msra.mxu0 0.0
    %1489 = vmatprep.subr.mxu0 0.0
    %1490 = vmatpush1.xpose.msra.mxu0 0.0
    %1491 = vmatprep.subr.mxu0 0.0
    %1492 = vmatpush1.xpose.msra.mxu0 0.0
    %1493 = vmatprep.mubr.f32.mxu0 %v1415
    %1494 = vmatmul.mubr.f32.gmra.mrb[0].mxu0 %v1411
    %v1495 = vpop.f32.mrb[0].mxu0
    %v1496 = vadd.f32 %v1246, %v1495
    %v1497 = vpop.f32.mrb[0].mxu0
    %1498 = vdwg.mxu0
    %1499 = vmatprep.subr.mxu0 %v313
    %1500 = vmatpush1.xpose.msra.mxu0 %v138
    %1501 = vmatprep.subr.mxu0 %v316
    %1502 = vmatpush1.xpose.msra.mxu0 %v142
    %1503 = vmatprep.subr.mxu0 0.0
    %1504 = vmatpush1.xpose.msra.mxu0 0.0
    %1505 = vmatprep.subr.mxu0 0.0
    %1506 = vmatpush1.xpose.msra.mxu0 0.0
    %1507 = vmatprep.subr.mxu0 0.0
    %1508 = vmatpush1.xpose.msra.mxu0 0.0
    %1509 = vmatprep.subr.mxu0 0.0
    %1510 = vmatpush1.xpose.msra.mxu0 0.0
    %1511 = vmatprep.subr.mxu0 0.0
    %1512 = vmatpush1.xpose.msra.mxu0 0.0
    %1513 = vmatprep.subr.mxu0 0.0
    %1514 = vmatpush1.xpose.msra.mxu0 0.0
    %1515 = vmatprep.subr.mxu0 0.0
    %1516 = vmatpush1.xpose.msra.mxu0 0.0
    %1517 = vmatprep.subr.mxu0 0.0
    %1518 = vmatpush1.xpose.msra.mxu0 0.0
    %1519 = vmatprep.subr.mxu0 0.0
    %1520 = vmatpush1.xpose.msra.mxu0 0.0
    %1521 = vmatprep.subr.mxu0 0.0
    %1522 = vmatpush1.xpose.msra.mxu0 0.0
    %1523 = vmatprep.subr.mxu0 0.0
    %1524 = vmatpush1.xpose.msra.mxu0 0.0
    %1525 = vmatprep.subr.mxu0 0.0
    %1526 = vmatpush1.xpose.msra.mxu0 0.0
    %1527 = vmatprep.subr.mxu0 0.0
    %1528 = vmatpush1.xpose.msra.mxu0 0.0
    %1529 = vmatprep.subr.mxu0 0.0
    %1530 = vmatpush1.xpose.msra.mxu0 0.0
    %1531 = vmatprep.subr.mxu0 0.0
    %1532 = vmatpush1.xpose.msra.mxu0 0.0
    %1533 = vmatprep.subr.mxu0 0.0
    %1534 = vmatpush1.xpose.msra.mxu0 0.0
    %1535 = vmatprep.subr.mxu0 0.0
    %1536 = vmatpush1.xpose.msra.mxu0 0.0
    %1537 = vmatprep.subr.mxu0 0.0
    %1538 = vmatpush1.xpose.msra.mxu0 0.0
    %1539 = vmatprep.subr.mxu0 0.0
    %1540 = vmatpush1.xpose.msra.mxu0 0.0
    %1541 = vmatprep.subr.mxu0 0.0
    %1542 = vmatpush1.xpose.msra.mxu0 0.0
    %1543 = vmatprep.subr.mxu0 0.0
    %1544 = vmatpush1.xpose.msra.mxu0 0.0
    %1545 = vmatprep.subr.mxu0 0.0
    %1546 = vmatpush1.xpose.msra.mxu0 0.0
    %1547 = vmatprep.subr.mxu0 0.0
    %1548 = vmatpush1.xpose.msra.mxu0 0.0
    %1549 = vmatprep.subr.mxu0 0.0
    %1550 = vmatpush1.xpose.msra.mxu0 0.0
    %1551 = vmatprep.subr.mxu0 0.0
    %1552 = vmatpush1.xpose.msra.mxu0 0.0
    %1553 = vmatprep.subr.mxu0 0.0
    %1554 = vmatpush1.xpose.msra.mxu0 0.0
    %1555 = vmatprep.subr.mxu0 0.0
    %1556 = vmatpush1.xpose.msra.mxu0 0.0
    %1557 = vmatprep.subr.mxu0 0.0
    %1558 = vmatpush1.xpose.msra.mxu0 0.0
    %1559 = vmatprep.subr.mxu0 0.0
    %1560 = vmatpush1.xpose.msra.mxu0 0.0
    %1561 = vmatprep.subr.mxu0 0.0
    %1562 = vmatpush1.xpose.msra.mxu0 0.0
    %1563 = vmatprep.mubr.f32.mxu0 %v1427
    %1564 = vmatmul.mubr.f32.gmra.mrb[0].mxu0 %v1419
    %v1565 = vpop.f32.mrb[0].mxu0
    %v1566 = vadd.f32 %v1496, %v1565
    %v1567 = vpop.f32.mrb[0].mxu0
    %1568 = vdwg.mxu0
    %v1569 = vadd.f32 %v1566, %v1325
    %v1570 = vadd.f32 %v1569, %v1404
    %vm1571 = vcmp.gt.f32.partialorder %v1570, 0.0
    %v1572 = vmin.f32 %v1570, 0.0
    %v1573 = vmul.f32 %v1572, 1.442695
    %v1574 = vpow.pop %v1573
    %v1575 = vsub.f32 %v1574, 1.0
    %v1576 = vsel %vm1571, %v1570, %v1575
    %vm1577 = vcmask 122880
    %1578 = vst.msk [vmem:[#allocation7] sm:$0x1] %vm1577, %v1576
    // Predicated region
    $region22: #{xdeepfm_forward.1} parent=1 // pred_check
      _
    $region23: #{xdeepfm_forward.1} parent=1 // pred_check_branch
      %1580 = sbr.rel (0) target = $region25
    $region24: #{xdeepfm_forward.1} parent=1 // pred_region
      %s1582 = ssub.s32 16, 16
      %1583 = vsyncadd [#allocation4], %s1582
      %s1585 = sshll.u32 [#allocation7], 4
      %s1586 = int_to_ptr.vmem [resolvable:$true] %s1585
      %1588 = dma.vmem_to_hbm [thread:$0]  %s1586, 16, %s3, [#allocation4]
    $region25: #{xdeepfm_forward.1} parent=1 // pred_fallthru
      _
    // Predicated region
    $region26: #{xdeepfm_forward.1} parent=1 // pred_check
      _
    $region27: #{xdeepfm_forward.1} parent=1 // pred_check_branch
      %1590 = sbr.rel (0) target = $region29
    $region28: #{xdeepfm_forward.1} parent=1 // pred_region
      %1591 = dma.done [#allocation4], 16
    $region29: #{xdeepfm_forward.1} parent=1 // pred_fallthru
      _
    %1592 = vsyncpa [#allocation3], 1
    %1593 = vsyncpa [#allocation6], 1
    %1594 = vsyncpa [#allocation4], 1

</llo_original>
